<compile_context>
chip_gen: v6e
topology: v6e:2x2x1
jax: 0.10.0
libtpu: 0.0.40
codegen_flags: <defaults>
</compile_context>

<pallas_src>
import math

import jax
import jax.numpy as jnp
from jax.experimental import pallas as pl
from jax.experimental.pallas import tpu as pltpu


# -----------------------------------------------------------------------------
# Fused encoder + decoder kernel (one batch block per grid step).
# -----------------------------------------------------------------------------
def make_fused_routing_kernel(b_blk, n_pad, n_real, f_in, hid_pad, d_pad, h_pad,
                              h_real, seq_len, max_trucks):
    inv_sqrt_h = 1.0 / math.sqrt(float(h_real))
    neg_inf = -1e9

    def kernel(a_ref, x_ref, depot_oh_ref,                    # (b,Np,Np) (b,Np,F) (b,1,Np)
               w1_ref, b1_ref, w2_ref, b2_ref,                # GCN weights (bf16 / f32 bias)
               wq_g_ref, bq_ref, wkc_ref, bk_ref,             # pointer weights (f32)
               node_out_ref, glob_out_ref, logits_ref, sel_ref,
               mask_sc, curq_sc):
        # ---------------- encoder: 2-layer dense GCN, whole batch block ----------------
        a = a_ref[...]                                        # (b_blk, Np, Np) bf16
        x = x_ref[...]                                        # (b_blk, Np, F)  bf16
        ax = jnp.einsum("bij,bjf->bif", a, x,
                        preferred_element_type=jnp.float32)   # f32 accumulate
        # Stack B*N onto the MXU M dim for the weight matmuls (views: Np is 8-aligned).
        h1 = jnp.dot(ax.reshape(b_blk * n_pad, f_in).astype(jnp.bfloat16),
                     w1_ref[...], preferred_element_type=jnp.float32) + b1_ref[...]
        h1 = jnp.maximum(h1, 0.0)                             # ReLU
        ah = jnp.einsum("bij,bjk->bik", a,
                        h1.astype(jnp.bfloat16).reshape(b_blk, n_pad, hid_pad),
                        preferred_element_type=jnp.float32)
        h2 = jnp.dot(ah.reshape(b_blk * n_pad, hid_pad).astype(jnp.bfloat16),
                     w2_ref[...], preferred_element_type=jnp.float32) + b2_ref[...]
        nodes = h2.reshape(b_blk, n_pad, d_pad)               # f32
        # Masked mean pool: exclude padded node rows, divide by the real node count.
        valid = (jax.lax.broadcasted_iota(jnp.int32, (1, n_pad, 1), 1)
                 < n_real).astype(jnp.float32)
        glob = jnp.sum(nodes * valid, axis=1) * (1.0 / n_real)  # (b_blk, Dp)
        node_out_ref[...] = nodes
        glob_out_ref[...] = glob[:, None, :]

        # ---------------- decoder invariants (hoisted out of the decode loop) ----------
        # One fused [Dp, 2Hp] matmul gives both keys and W_qc-projected node embeddings.
        kc = jnp.dot(h2, wkc_ref[...], preferred_element_type=jnp.float32)
        keys = (kc[:, :h_pad] + bk_ref[...]).reshape(b_blk, n_pad, h_pad)
        proj_nodes = kc[:, h_pad:].reshape(b_blk, n_pad, h_pad)
        q_base = jnp.dot(glob, wq_g_ref[...],
                         preferred_element_type=jnp.float32) + bq_ref[...]  # (b_blk, Hp)

        ids = jax.lax.broadcasted_iota(jnp.int32, (b_blk, n_pad), 1)        # node ids
        depot_oh = depot_oh_ref[:, 0, :]                                    # (b_blk, Np)
        pad_neg = jnp.where(ids >= n_real, neg_inf, 0.0)
        # Hard mask: -1e9 on depot (visited up-front) and on padded nodes.
        mask_sc[...] = depot_oh * neg_inf + pad_neg
        # Per-truck "current node" state kept in projected query space (Hp) so the
        # per-step query needs no matmul: q = tanh(q_base + curq[truck]).
        depot_q = jnp.sum(depot_oh[:, :, None] * proj_nodes, axis=1)        # (b_blk, Hp)
        curq_sc[...] = jnp.broadcast_to(depot_q[None, :, :],
                                        (max_trucks, b_blk, h_pad))

        # ---------------- greedy interleaved hard-mask decoding ----------------
        @pl.loop(0, seq_len)
        def _(t):
            truck = t % max_trucks
            q = jnp.tanh(q_base + curq_sc[truck])                           # (b_blk, Hp)
            # VPU broadcast-multiply + lane reduce (no MXU matvec in the serial chain).
            scores = jnp.sum(q[:, None, :] * keys, axis=-1) * inv_sqrt_h    # (b_blk, Np)
            masked = scores + mask_sc[...]
            # argmax with first-index tie-break (matches torch.argmax).
            m = jnp.max(masked, axis=-1, keepdims=True)
            idx = jnp.min(jnp.where(masked >= m, ids, n_pad),
                          axis=-1, keepdims=True)                           # (b_blk, 1)
            # Dynamic single-row stores (no per-step full-block select-accumulate).
            logits_ref[:, pl.ds(t, 1), :] = masked[:, None, :]
            sel_ref[:, pl.ds(t, 1), :] = idx[:, :, None]
            # Update this truck's current node (projected) and the visited mask.
            onehot = (ids == idx).astype(jnp.float32)                       # (b_blk, Np)
            curq_sc[truck] = jnp.sum(onehot[:, :, None] * proj_nodes, axis=1)
            mask_sc[...] = jnp.where(onehot > 0.5, neg_inf, mask_sc[...])

    return kernel


# -----------------------------------------------------------------------------
# Full model wrapper (RLRoutingModel.forward, greedy / no teacher forcing).
# -----------------------------------------------------------------------------
def _round_up(x, m):
    return ((x + m - 1) // m) * m


def _pad_to(arr, axis, size):
    if arr.shape[axis] == size:
        return arr
    pad = [(0, 0)] * arr.ndim
    pad[axis] = (0, size - arr.shape[axis])
    return jnp.pad(arr, pad)


def rl_routing_forward(a, x, depot_indices, params, seq_len, max_trucks,
                       batch_block=None):
    B, N, Fin = x.shape
    Hid = params["w1"].shape[1]
    D = params["w2"].shape[1]
    H = params["wk"].shape[1]
    # Hard-mask greedy decode would revisit masked nodes once all are visited.
    assert seq_len <= N - 1, "seq_len must not exceed number of non-depot nodes"

    LANE = 128
    N_pad = _round_up(N, LANE)
    Hid_pad = _round_up(Hid, LANE)
    D_pad = _round_up(D, LANE)
    H_pad = _round_up(H, LANE)

    # Weight bytes resident in VMEM (double-buffered by the pipeline).
    w_bytes = (Fin * Hid_pad * 2 + Hid_pad * 4 + Hid_pad * D_pad * 2 + D_pad * 4
               + D_pad * H_pad * 4 + H_pad * 4 + D_pad * 2 * H_pad * 4 + H_pad * 4)

    def vmem_est(bb):
        in_blk = bb * (N_pad * N_pad * 2 + N_pad * Fin * 2 + N_pad * 4)
        out_blk = bb * (N_pad * D_pad * 4 + D_pad * 4
                        + seq_len * N_pad * 4 + seq_len * 4)
        scratch = bb * N_pad * 4 + max_trucks * bb * H_pad * 4
        interm = bb * N_pad * (Fin + Hid_pad + D_pad + 3 * H_pad) * 4
        return 2 * (in_blk + out_blk + w_bytes) + scratch + interm

    if batch_block is None:
        # >=2 (ideally ~4) grid steps for DMA/compute overlap and v7x 2-TC sharding,
        # subject to an explicit VMEM budget that also fits v7x's 64 MiB physical VMEM.
        budget = int(0.7 * (48 << 20))
        target = max(1, B // 4)
        batch_block = 1
        for d in range(1, B + 1):
            if B % d == 0 and d <= target and vmem_est(d) <= budget:
                batch_block = d
    assert B % batch_block == 0, "batch must divide evenly into batch blocks"
    num_blocks = B // batch_block
    vmem_limit = int(min(56 << 20, max(32 << 20, 2 * vmem_est(batch_block))))

    # ---- pad / cast inputs and weights (padding is zero => results unchanged) ----
    a_p = _pad_to(_pad_to(a, 1, N_pad), 2, N_pad).astype(jnp.bfloat16)
    x_p = _pad_to(x, 1, N_pad).astype(jnp.bfloat16)
    depot_oh = jax.nn.one_hot(depot_indices.astype(jnp.int32), N_pad,
                              dtype=jnp.float32).reshape(B, 1, N_pad)

    w1 = _pad_to(params["w1"], 1, Hid_pad).astype(jnp.bfloat16)
    b1 = _pad_to(params["b1"], 1, Hid_pad).astype(jnp.float32)
    w2 = _pad_to(_pad_to(params["w2"], 0, Hid_pad), 1, D_pad).astype(jnp.bfloat16)
    b2 = _pad_to(params["b2"], 1, D_pad).astype(jnp.float32)
    wq_g = _pad_to(_pad_to(params["wq_g"], 0, D_pad), 1, H_pad).astype(jnp.float32)
    bq = _pad_to(params["bq"], 1, H_pad).astype(jnp.float32)
    wk = _pad_to(_pad_to(params["wk"], 0, D_pad), 1, H_pad)
    wq_c = _pad_to(_pad_to(params["wq_c"], 0, D_pad), 1, H_pad)
    wkc = jnp.concatenate([wk, wq_c], axis=1).astype(jnp.float32)   # (D_pad, 2*H_pad)
    bk = _pad_to(params["bk"], 1, H_pad).astype(jnp.float32)

    kernel = make_fused_routing_kernel(batch_block, N_pad, N, Fin, Hid_pad,
                                       D_pad, H_pad, H, seq_len, max_trucks)

    def wspec(shape):
        return pl.BlockSpec(shape, lambda b: (0,) * len(shape))

    node_emb, glob_emb, logits, sel3 = pl.pallas_call(
        kernel,
        out_shape=(
            jax.ShapeDtypeStruct((B, N_pad, D_pad), jnp.float32),
            jax.ShapeDtypeStruct((B, 1, D_pad), jnp.float32),
            jax.ShapeDtypeStruct((B, seq_len, N_pad), jnp.float32),
            jax.ShapeDtypeStruct((B, seq_len, 1), jnp.int32),
        ),
        grid_spec=pltpu.PrefetchScalarGridSpec(
            num_scalar_prefetch=0,
            grid=(num_blocks,),
            in_specs=[
                pl.BlockSpec((batch_block, N_pad, N_pad), lambda b: (b, 0, 0)),
                pl.BlockSpec((batch_block, N_pad, Fin), lambda b: (b, 0, 0)),
                pl.BlockSpec((batch_block, 1, N_pad), lambda b: (b, 0, 0)),
                wspec((Fin, Hid_pad)),      # w1
                wspec((1, Hid_pad)),        # b1
                wspec((Hid_pad, D_pad)),    # w2
                wspec((1, D_pad)),          # b2
                wspec((D_pad, H_pad)),      # wq_g
                wspec((1, H_pad)),          # bq
                wspec((D_pad, 2 * H_pad)),  # wkc = [wk | wq_c]
                wspec((1, H_pad)),          # bk
            ],
            out_specs=(
                pl.BlockSpec((batch_block, N_pad, D_pad), lambda b: (b, 0, 0)),
                pl.BlockSpec((batch_block, 1, D_pad), lambda b: (b, 0, 0)),
                pl.BlockSpec((batch_block, seq_len, N_pad), lambda b: (b, 0, 0)),
                pl.BlockSpec((batch_block, seq_len, 1), lambda b: (b, 0, 0)),
            ),
            scratch_shapes=[
                pltpu.VMEM((batch_block, N_pad), jnp.float32),               # visited mask
                pltpu.VMEM((max_trucks, batch_block, H_pad), jnp.float32),   # per-truck q
            ],
        ),
        compiler_params=pltpu.CompilerParams(
            dimension_semantics=("parallel",),
            vmem_limit_bytes=vmem_limit),
    )(a_p, x_p, depot_oh, w1, b1, w2, b2, wq_g, bq, wkc, bk)

    logits = logits[:, :, :N]
    selections = sel3[:, :, 0]
    node_emb = node_emb[:, :N, :D]
    glob_emb = glob_emb[:, :, :D]
    return logits, selections, node_emb, glob_emb


# -----------------------------------------------------------------------------
# Parameter / input helpers.
# -----------------------------------------------------------------------------
def init_params(key, node_in_dim, gnn_hid, gnn_out, ptr_hid):
    ks = jax.random.split(key, 5)
    s = 0.1
    p = {
        "w1": jax.random.normal(ks[0], (node_in_dim, gnn_hid)) * s,
        "b1": jnp.zeros((1, gnn_hid)),
        "w2": jax.random.normal(ks[1], (gnn_hid, gnn_out)) * s,
        "b2": jnp.zeros((1, gnn_out)),
        "wq_g": jax.random.normal(ks[2], (gnn_out, ptr_hid)) * s,
        "wq_c": jax.random.normal(ks[3], (gnn_out, ptr_hid)) * s,
        "bq": jnp.zeros((1, ptr_hid)),
        "wk": jax.random.normal(ks[4], (gnn_out, ptr_hid)) * s,
        "bk": jnp.zeros((1, ptr_hid)),
    }
    return jax.tree.map(lambda v: v.astype(jnp.float32), p)


def ring_graph_normalized_adjacency(batch, n):
    # ring graph + self loops, symmetric normalization D^-1/2 (A + I) D^-1/2
    idx = jnp.arange(n)
    a = jnp.zeros((n, n), jnp.float32)
    a = a.at[idx, (idx + 1) % n].set(1.0)
    a = a.at[idx, (idx - 1) % n].set(1.0)
    a = a + jnp.eye(n, dtype=jnp.float32)
    deg = jnp.sum(a, axis=1)
    d_inv_sqrt = 1.0 / jnp.sqrt(deg)
    a_norm = a * d_inv_sqrt[:, None] * d_inv_sqrt[None, :]
    return jnp.broadcast_to(a_norm, (batch, n, n))


if __name__ == "__main__":
    # small config consistent with RLRoutingModel.__init__
    B = 2               # batch of graphs
    N = 16              # padded nodes per graph
    node_in_dim = 4
    gnn_hid = 32
    gnn_out = 32
    ptr_hid = 32
    seq_len = 8
    max_trucks = 3
    # num_heads=4, num_layers=2, dropout=0.1 -> see TODO(synk) above

    key = jax.random.PRNGKey(0)
    k_param, k_x = jax.random.split(key)
    params = init_params(k_param, node_in_dim, gnn_hid, gnn_out, ptr_hid)

    a = ring_graph_normalized_adjacency(B, N)
    x = jax.random.normal(k_x, (B, N, node_in_dim), dtype=jnp.float32)
    depot_indices = jnp.array([0, 3], dtype=jnp.int32)

    logits, selections, node_emb, glob_emb = jax.jit(
        rl_routing_forward, static_argnums=(4, 5)
    )(a, x, depot_indices, params, seq_len, max_trucks)
    jax.block_until_ready((logits, selections, node_emb, glob_emb))

    assert logits.shape == (B, seq_len, N)
    assert selections.shape == (B, seq_len)
    assert node_emb.shape == (B, N, gnn_out)
    assert glob_emb.shape == (B, 1, gnn_out)
    assert bool(jnp.all(selections >= 0)) and bool(jnp.all(selections < N))
    print("KERNEL_OK")
</pallas_src>

<mosaic_0001>
module attributes {stable_mosaic.version = 11 : i64} {
  func.func @kernel(%arg0: i32, %arg1: memref<1x128x128xbf16, #tpu.memory_space<vmem>>, %arg2: memref<1x128x4xbf16, #tpu.memory_space<vmem>>, %arg3: memref<1x1x128xf32, #tpu.memory_space<vmem>>, %arg4: memref<4x128xbf16, #tpu.memory_space<vmem>>, %arg5: memref<1x128xf32, #tpu.memory_space<vmem>>, %arg6: memref<128x128xbf16, #tpu.memory_space<vmem>>, %arg7: memref<1x128xf32, #tpu.memory_space<vmem>>, %arg8: memref<128x128xf32, #tpu.memory_space<vmem>>, %arg9: memref<1x128xf32, #tpu.memory_space<vmem>>, %arg10: memref<128x256xf32, #tpu.memory_space<vmem>>, %arg11: memref<1x128xf32, #tpu.memory_space<vmem>>, %arg12: memref<1x128x128xf32, #tpu.memory_space<vmem>>, %arg13: memref<1x1x128xf32, #tpu.memory_space<vmem>>, %arg14: memref<1x8x128xf32, #tpu.memory_space<vmem>>, %arg15: memref<1x8x1xi32, #tpu.memory_space<vmem>>, %arg16: memref<1x128xf32, #tpu.memory_space<vmem>>, %arg17: memref<3x1x128xf32, #tpu.memory_space<vmem>>) attributes {dimension_semantics = [#tpu.dimension_semantics<parallel>], iteration_bounds = array<i64: 2>, scalar_prefetch = 0 : i64, scratch_operands = 2 : i64, tpu.core_type = #tpu.core_type<tc>, window_params = [{transform_indices = @transform_0, window_bounds = array<i64: 1, 128, 128>}, {transform_indices = @transform_1, window_bounds = array<i64: 1, 128, 4>}, {transform_indices = @transform_2, window_bounds = array<i64: 1, 1, 128>}, {pipeline_mode = #tpu.pipeline_mode<synchronous>, transform_indices = @transform_3, window_bounds = array<i64: 4, 128>}, {pipeline_mode = #tpu.pipeline_mode<synchronous>, transform_indices = @transform_4, window_bounds = array<i64: 1, 128>}, {pipeline_mode = #tpu.pipeline_mode<synchronous>, transform_indices = @transform_5, window_bounds = array<i64: 128, 128>}, {pipeline_mode = #tpu.pipeline_mode<synchronous>, transform_indices = @transform_6, window_bounds = array<i64: 1, 128>}, {pipeline_mode = #tpu.pipeline_mode<synchronous>, transform_indices = @transform_7, window_bounds = array<i64: 128, 128>}, {pipeline_mode = #tpu.pipeline_mode<synchronous>, transform_indices = @transform_8, window_bounds = array<i64: 1, 128>}, {pipeline_mode = #tpu.pipeline_mode<synchronous>, transform_indices = @transform_9, window_bounds = array<i64: 128, 256>}, {pipeline_mode = #tpu.pipeline_mode<synchronous>, transform_indices = @transform_10, window_bounds = array<i64: 1, 128>}, {transform_indices = @transform_11, window_bounds = array<i64: 1, 128, 128>}, {transform_indices = @transform_12, window_bounds = array<i64: 1, 1, 128>}, {transform_indices = @transform_13, window_bounds = array<i64: 1, 8, 128>}, {transform_indices = @transform_14, window_bounds = array<i64: 1, 8, 1>}]} {
    %c0 = arith.constant 0 : index
    %c0_0 = arith.constant 0 : index
    %c0_1 = arith.constant 0 : index
    %0 = vector.load %arg1[%c0, %c0_0, %c0_1] : memref<1x128x128xbf16, #tpu.memory_space<vmem>>, vector<1x128x128xbf16>
    %c0_2 = arith.constant 0 : index
    %c0_3 = arith.constant 0 : index
    %c0_4 = arith.constant 0 : index
    %1 = vector.load %arg2[%c0_2, %c0_3, %c0_4] : memref<1x128x4xbf16, #tpu.memory_space<vmem>>, vector<1x128x4xbf16>
    "tpu.trace_start"() <{level = 10 : i32, message = "bij,bjf->bif"}> : () -> ()
    %cst = arith.constant dense<0.000000e+00> : vector<1x128x4xf32>
    %2 = tpu.matmul %0, %1, %cst {dimension_numbers = #tpu.dot_dimension_numbers<[2], [1], [1], [2], [0, 0, 0, 1, 1, 2], [0], [0]>} : vector<1x128x128xbf16>, vector<1x128x4xbf16>, vector<1x128x4xf32> -> vector<1x128x4xf32>
    "tpu.trace_stop"() : () -> ()
    %3 = vector.shape_cast %2 : vector<1x128x4xf32> to vector<128x4xf32>
    %4 = arith.truncf %3 : vector<128x4xf32> to vector<128x4xbf16>
    %c0_5 = arith.constant 0 : index
    %c0_6 = arith.constant 0 : index
    %5 = vector.load %arg4[%c0_5, %c0_6] : memref<4x128xbf16, #tpu.memory_space<vmem>>, vector<4x128xbf16>
    %cst_7 = arith.constant dense<0.000000e+00> : vector<128x128xf32>
    %6 = tpu.matmul %4, %5, %cst_7 {dimension_numbers = #tpu.dot_dimension_numbers<[1], [0], [0], [1], [0, 0, 1, 1], [], []>} : vector<128x4xbf16>, vector<4x128xbf16>, vector<128x128xf32> -> vector<128x128xf32>
    %c0_8 = arith.constant 0 : index
    %c0_9 = arith.constant 0 : index
    %7 = vector.load %arg5[%c0_8, %c0_9] : memref<1x128xf32, #tpu.memory_space<vmem>>, vector<1x128xf32>
    %8 = vector.broadcast %7 : vector<1x128xf32> to vector<128x128xf32>
    %9 = arith.addf %6, %8 : vector<128x128xf32>
    %cst_10 = arith.constant 0.000000e+00 : f32
    %10 = vector.broadcast %cst_10 : f32 to vector<128x128xf32>
    %11 = arith.maximumf %9, %10 : vector<128x128xf32>
    %12 = arith.truncf %11 : vector<128x128xf32> to vector<128x128xbf16>
    %13 = vector.shape_cast %12 : vector<128x128xbf16> to vector<1x128x128xbf16>
    "tpu.trace_start"() <{level = 10 : i32, message = "bij,bjk->bik"}> : () -> ()
    %cst_11 = arith.constant dense<0.000000e+00> : vector<1x128x128xf32>
    %14 = tpu.matmul %0, %13, %cst_11 {dimension_numbers = #tpu.dot_dimension_numbers<[2], [1], [1], [2], [0, 0, 0, 1, 1, 2], [0], [0]>} : vector<1x128x128xbf16>, vector<1x128x128xbf16>, vector<1x128x128xf32> -> vector<1x128x128xf32>
    "tpu.trace_stop"() : () -> ()
    %15 = vector.shape_cast %14 : vector<1x128x128xf32> to vector<128x128xf32>
    %16 = arith.truncf %15 : vector<128x128xf32> to vector<128x128xbf16>
    %c0_12 = arith.constant 0 : index
    %c0_13 = arith.constant 0 : index
    %17 = vector.load %arg6[%c0_12, %c0_13] : memref<128x128xbf16, #tpu.memory_space<vmem>>, vector<128x128xbf16>
    %cst_14 = arith.constant dense<0.000000e+00> : vector<128x128xf32>
    %18 = tpu.matmul %16, %17, %cst_14 {dimension_numbers = #tpu.dot_dimension_numbers<[1], [0], [0], [1], [0, 0, 1, 1], [], []>} : vector<128x128xbf16>, vector<128x128xbf16>, vector<128x128xf32> -> vector<128x128xf32>
    %c0_15 = arith.constant 0 : index
    %c0_16 = arith.constant 0 : index
    %19 = vector.load %arg7[%c0_15, %c0_16] : memref<1x128xf32, #tpu.memory_space<vmem>>, vector<1x128xf32>
    %20 = vector.broadcast %19 : vector<1x128xf32> to vector<128x128xf32>
    %21 = arith.addf %18, %20 : vector<128x128xf32>
    %22 = vector.shape_cast %21 : vector<128x128xf32> to vector<1x128x128xf32>
    %23 = tpu.iota {dimensions = array<i32: 1>} : vector<1x128x1xi32>
    %c16_i32 = arith.constant 16 : i32
    %24 = vector.broadcast %c16_i32 : i32 to vector<1x128x1xi32>
    %25 = arith.cmpi slt, %23, %24 : vector<1x128x1xi32>
    %26 = arith.extui %25 : vector<1x128x1xi1> to vector<1x128x1xi32>
    %27 = arith.sitofp %26 : vector<1x128x1xi32> to vector<1x128x1xf32>
    %28 = vector.broadcast %27 : vector<1x128x1xf32> to vector<1x128x128xf32>
    %29 = arith.mulf %22, %28 : vector<1x128x128xf32>
    %cst_17 = arith.constant dense<0.000000e+00> : vector<1x128xf32>
    %30 = vector.multi_reduction <add>, %29, %cst_17 [1] : vector<1x128x128xf32> to vector<1x128xf32>
    %cst_18 = arith.constant 6.250000e-02 : f32
    %31 = vector.broadcast %cst_18 : f32 to vector<1x128xf32>
    %32 = arith.mulf %30, %31 : vector<1x128xf32>
    %c0_19 = arith.constant 0 : index
    %c0_20 = arith.constant 0 : index
    %c0_21 = arith.constant 0 : index
    %33 = vector.load %arg12[%c0_19, %c0_20, %c0_21] : memref<1x128x128xf32, #tpu.memory_space<vmem>>, vector<1x128x128xf32>
    tpu.vector_store %arg12[%c0_19, %c0_20, %c0_21], %22 {strides = array<i32>} : memref<1x128x128xf32, #tpu.memory_space<vmem>>, vector<1x128x128xf32>,
    %34 = vector.shape_cast %32 : vector<1x128xf32> to vector<1x1x128xf32>
    %c0_22 = arith.constant 0 : index
    %c0_23 = arith.constant 0 : index
    %c0_24 = arith.constant 0 : index
    %35 = vector.load %arg13[%c0_22, %c0_23, %c0_24] : memref<1x1x128xf32, #tpu.memory_space<vmem>>, vector<1x1x128xf32>
    tpu.vector_store %arg13[%c0_22, %c0_23, %c0_24], %34 {strides = array<i32>} : memref<1x1x128xf32, #tpu.memory_space<vmem>>, vector<1x1x128xf32>,
    %c0_25 = arith.constant 0 : index
    %c0_26 = arith.constant 0 : index
    %36 = vector.load %arg10[%c0_25, %c0_26] : memref<128x256xf32, #tpu.memory_space<vmem>>, vector<128x256xf32>
    %cst_27 = arith.constant dense<0.000000e+00> : vector<128x256xf32>
    %37 = tpu.matmul %21, %36, %cst_27 {dimension_numbers = #tpu.dot_dimension_numbers<[1], [0], [0], [1], [0, 0, 1, 1], [], []>} : vector<128x128xf32>, vector<128x256xf32>, vector<128x256xf32> -> vector<128x256xf32>
    %38 = vector.extract_strided_slice %37 {offsets = [0, 0], sizes = [128, 128], strides = [1, 1]} : vector<128x256xf32> to vector<128x128xf32>
    %c0_28 = arith.constant 0 : index
    %c0_29 = arith.constant 0 : index
    %39 = vector.load %arg11[%c0_28, %c0_29] : memref<1x128xf32, #tpu.memory_space<vmem>>, vector<1x128xf32>
    %40 = vector.broadcast %39 : vector<1x128xf32> to vector<128x128xf32>
    %41 = arith.addf %38, %40 : vector<128x128xf32>
    %42 = vector.shape_cast %41 : vector<128x128xf32> to vector<1x128x128xf32>
    %43 = vector.extract_strided_slice %37 {offsets = [0, 128], sizes = [128, 128], strides = [1, 1]} : vector<128x256xf32> to vector<128x128xf32>
    %44 = vector.shape_cast %43 : vector<128x128xf32> to vector<1x128x128xf32>
    %c0_30 = arith.constant 0 : index
    %c0_31 = arith.constant 0 : index
    %45 = vector.load %arg8[%c0_30, %c0_31] : memref<128x128xf32, #tpu.memory_space<vmem>>, vector<128x128xf32>
    %cst_32 = arith.constant dense<0.000000e+00> : vector<1x128xf32>
    %46 = tpu.matmul %32, %45, %cst_32 {dimension_numbers = #tpu.dot_dimension_numbers<[1], [0], [0], [1], [0, 0, 1, 1], [], []>} : vector<1x128xf32>, vector<128x128xf32>, vector<1x128xf32> -> vector<1x128xf32>
    %c0_33 = arith.constant 0 : index
    %c0_34 = arith.constant 0 : index
    %47 = vector.load %arg9[%c0_33, %c0_34] : memref<1x128xf32, #tpu.memory_space<vmem>>, vector<1x128xf32>
    %48 = arith.addf %46, %47 : vector<1x128xf32>
    %49 = tpu.iota {dimensions = array<i32: 1>} : vector<1x128xi32>
    %c0_35 = arith.constant 0 : index
    %c0_36 = arith.constant 0 : index
    %c0_37 = arith.constant 0 : index
    %50 = vector.load %arg3[%c0_35, %c0_36, %c0_37] : memref<1x1x128xf32, #tpu.memory_space<vmem>>, vector<1x1x128xf32>
    %51 = vector.shape_cast %50 : vector<1x1x128xf32> to vector<1x128xf32>
    %c16_i32_38 = arith.constant 16 : i32
    %52 = vector.broadcast %c16_i32_38 : i32 to vector<1x128xi32>
    %53 = arith.cmpi sge, %49, %52 : vector<1x128xi32>
    %cst_39 = arith.constant -1.000000e+09 : f32
    %cst_40 = arith.constant 0.000000e+00 : f32
    %54 = vector.broadcast %cst_39 : f32 to vector<1x128xf32>
    %55 = vector.broadcast %cst_40 : f32 to vector<1x128xf32>
    %56 = arith.select %53, %54, %55 : vector<1x128xi1>, vector<1x128xf32>
    %cst_41 = arith.constant -1.000000e+09 : f32
    %57 = vector.broadcast %cst_41 : f32 to vector<1x128xf32>
    %58 = arith.mulf %51, %57 : vector<1x128xf32>
    %59 = arith.addf %58, %56 : vector<1x128xf32>
    %c0_42 = arith.constant 0 : index
    %c0_43 = arith.constant 0 : index
    %60 = vector.load %arg16[%c0_42, %c0_43] : memref<1x128xf32, #tpu.memory_space<vmem>>, vector<1x128xf32>
    tpu.vector_store %arg16[%c0_42, %c0_43], %59 {strides = array<i32>} : memref<1x128xf32, #tpu.memory_space<vmem>>, vector<1x128xf32>,
    %61 = vector.shape_cast %51 : vector<1x128xf32> to vector<1x128x1xf32>
    %62 = vector.broadcast %61 : vector<1x128x1xf32> to vector<1x128x128xf32>
    %63 = arith.mulf %62, %44 : vector<1x128x128xf32>
    %cst_44 = arith.constant dense<0.000000e+00> : vector<1x128xf32>
    %64 = vector.multi_reduction <add>, %63, %cst_44 [1] : vector<1x128x128xf32> to vector<1x128xf32>
    %65 = vector.shape_cast %64 : vector<1x128xf32> to vector<1x1x128xf32>
    %66 = vector.shape_cast %65 : vector<1x1x128xf32> to vector<1x1x128xf32>
    %67 = vector.broadcast %66 : vector<1x1x128xf32> to vector<3x1x128xf32>
    %c0_45 = arith.constant 0 : index
    %c0_46 = arith.constant 0 : index
    %c0_47 = arith.constant 0 : index
    %68 = vector.load %arg17[%c0_45, %c0_46, %c0_47] : memref<3x1x128xf32, #tpu.memory_space<vmem>>, vector<3x1x128xf32>
    tpu.vector_store %arg17[%c0_45, %c0_46, %c0_47], %67 {strides = array<i32>} : memref<3x1x128xf32, #tpu.memory_space<vmem>>, vector<3x1x128xf32>,
    %c0_i32 = arith.constant 0 : i32
    %c8_i32 = arith.constant 8 : i32
    %69 = arith.addi %c0_i32, %c8_i32 : i32
    %c1_i32 = arith.constant 1 : i32
    scf.for %arg18 = %c0_i32 to %69 step %c1_i32  : i32 {
      %c1_i32_49 = arith.constant 1 : i32
      %70 = arith.muli %arg18, %c1_i32_49 : i32
      %c0_i32_50 = arith.constant 0 : i32
      %71 = arith.addi %c0_i32_50, %70 : i32
      %c3_i32 = arith.constant 3 : i32
      %c0_i32_51 = arith.constant 0 : i32
      %72 = arith.cmpi eq, %c3_i32, %c0_i32_51 : i32
      %c1_i32_52 = arith.constant 1 : i32
      %73 = arith.select %72, %c1_i32_52, %c3_i32 : i32
      %74 = arith.remsi %71, %73 : i32
      %c0_i32_53 = arith.constant 0 : i32
      %75 = arith.cmpi ne, %74, %c0_i32_53 : i32
      %c0_i32_54 = arith.constant 0 : i32
      %76 = arith.cmpi slt, %74, %c0_i32_54 : i32
      %c0_i32_55 = arith.constant 0 : i32
      %77 = arith.cmpi slt, %73, %c0_i32_55 : i32
      %78 = arith.xori %76, %77 : i1
      %79 = arith.andi %78, %75 : i1
      %80 = arith.addi %74, %73 : i32
      %81 = arith.select %79, %80, %74 : i32
      %82 = arith.index_cast %81 : i32 to index
      %c0_56 = arith.constant 0 : index
      %c0_57 = arith.constant 0 : index
      %83 = vector.load %arg17[%82, %c0_56, %c0_57] : memref<3x1x128xf32, #tpu.memory_space<vmem>>, vector<1x1x128xf32>
      %84 = vector.shape_cast %83 : vector<1x1x128xf32> to vector<1x128xf32>
      %85 = arith.addf %48, %84 : vector<1x128xf32>
      %86 = math.tanh %85 : vector<1x128xf32>
      %87 = vector.shape_cast %86 : vector<1x128xf32> to vector<1x1x128xf32>
      %88 = vector.broadcast %87 : vector<1x1x128xf32> to vector<1x128x128xf32>
      %89 = arith.mulf %88, %42 : vector<1x128x128xf32>
      %cst_58 = arith.constant dense<0.000000e+00> : vector<1x128xf32>
      %90 = vector.multi_reduction <add>, %89, %cst_58 [2] : vector<1x128x128xf32> to vector<1x128xf32>
      %cst_59 = arith.constant 0.176776692 : f32
      %91 = vector.broadcast %cst_59 : f32 to vector<1x128xf32>
      %92 = arith.mulf %90, %91 : vector<1x128xf32>
      %c0_60 = arith.constant 0 : index
      %c0_61 = arith.constant 0 : index
      %93 = vector.load %arg16[%c0_60, %c0_61] : memref<1x128xf32, #tpu.memory_space<vmem>>, vector<1x128xf32>
      %94 = arith.addf %92, %93 : vector<1x128xf32>
      %cst_62 = arith.constant dense<0xFF800000> : vector<1xf32>
      %95 = vector.multi_reduction <maximumf>, %94, %cst_62 [1] : vector<1x128xf32> to vector<1xf32>
      %96 = vector.shape_cast %95 : vector<1xf32> to vector<1x1xf32>
      %97 = vector.broadcast %96 : vector<1x1xf32> to vector<1x128xf32>
      %98 = arith.cmpf oge, %94, %97 : vector<1x128xf32>
      %c128_i32 = arith.constant 128 : i32
      %99 = vector.broadcast %c128_i32 : i32 to vector<1x128xi32>
      %100 = arith.select %98, %49, %99 : vector<1x128xi1>, vector<1x128xi32>
      %cst_63 = arith.constant dense<2147483647> : vector<1xi32>
      %101 = vector.multi_reduction <minsi>, %100, %cst_63 [1] : vector<1x128xi32> to vector<1xi32>
      %102 = vector.shape_cast %101 : vector<1xi32> to vector<1x1xi32>
      %103 = vector.shape_cast %94 : vector<1x128xf32> to vector<1x1x128xf32>
      %c0_64 = arith.constant 0 : index
      %104 = arith.index_cast %71 : i32 to index
      %c0_65 = arith.constant 0 : index
      %105 = vector.load %arg14[%c0_64, %104, %c0_65] : memref<1x8x128xf32, #tpu.memory_space<vmem>>, vector<1x1x128xf32>
      tpu.vector_store %arg14[%c0_64, %104, %c0_65], %103 {strides = array<i32>} : memref<1x8x128xf32, #tpu.memory_space<vmem>>, vector<1x1x128xf32>,
      %106 = vector.shape_cast %102 : vector<1x1xi32> to vector<1x1x1xi32>
      %c0_66 = arith.constant 0 : index
      %107 = arith.index_cast %71 : i32 to index
      %c0_67 = arith.constant 0 : index
      %108 = vector.load %arg15[%c0_66, %107, %c0_67] : memref<1x8x1xi32, #tpu.memory_space<vmem>>, vector<1x1x1xi32>
      tpu.vector_store %arg15[%c0_66, %107, %c0_67], %106 {strides = array<i32>} : memref<1x8x1xi32, #tpu.memory_space<vmem>>, vector<1x1x1xi32>,
      %109 = vector.broadcast %102 : vector<1x1xi32> to vector<1x128xi32>
      %110 = arith.cmpi eq, %49, %109 : vector<1x128xi32>
      %111 = arith.extui %110 : vector<1x128xi1> to vector<1x128xi32>
      %112 = arith.sitofp %111 : vector<1x128xi32> to vector<1x128xf32>
      %113 = vector.shape_cast %112 : vector<1x128xf32> to vector<1x128x1xf32>
      %114 = vector.broadcast %113 : vector<1x128x1xf32> to vector<1x128x128xf32>
      %115 = arith.mulf %114, %44 : vector<1x128x128xf32>
      %cst_68 = arith.constant dense<0.000000e+00> : vector<1x128xf32>
      %116 = vector.multi_reduction <add>, %115, %cst_68 [1] : vector<1x128x128xf32> to vector<1x128xf32>
      %117 = arith.index_cast %81 : i32 to index
      %c0_69 = arith.constant 0 : index
      %c0_70 = arith.constant 0 : index
      %118 = vector.load %arg17[%117, %c0_69, %c0_70] : memref<3x1x128xf32, #tpu.memory_space<vmem>>, vector<1x1x128xf32>
      %119 = vector.shape_cast %118 : vector<1x1x128xf32> to vector<1x128xf32>
      %120 = vector.shape_cast %116 : vector<1x128xf32> to vector<1x1x128xf32>
      tpu.vector_store %arg17[%117, %c0_69, %c0_70], %120 {strides = array<i32>} : memref<3x1x128xf32, #tpu.memory_space<vmem>>, vector<1x1x128xf32>,
      %cst_71 = arith.constant 5.000000e-01 : f32
      %121 = vector.broadcast %cst_71 : f32 to vector<1x128xf32>
      %122 = arith.cmpf ogt, %112, %121 : vector<1x128xf32>
      %c0_72 = arith.constant 0 : index
      %c0_73 = arith.constant 0 : index
      %123 = vector.load %arg16[%c0_72, %c0_73] : memref<1x128xf32, #tpu.memory_space<vmem>>, vector<1x128xf32>
      %cst_74 = arith.constant -1.000000e+09 : f32
      %124 = vector.broadcast %cst_74 : f32 to vector<1x128xf32>
      %125 = arith.select %122, %124, %123 : vector<1x128xi1>, vector<1x128xf32>
      %c0_75 = arith.constant 0 : index
      %c0_76 = arith.constant 0 : index
      %126 = vector.load %arg16[%c0_75, %c0_76] : memref<1x128xf32, #tpu.memory_space<vmem>>, vector<1x128xf32>
      tpu.vector_store %arg16[%c0_75, %c0_76], %125 {strides = array<i32>} : memref<1x128xf32, #tpu.memory_space<vmem>>, vector<1x128xf32>,
    }
    %c8_i32_48 = arith.constant 8 : i32
    return
  }
  func.func @transform_0(%arg0: i32) -> (i32, i32, i32) {
    %c0_i32 = arith.constant 0 : i32
    %c0_i32_0 = arith.constant 0 : i32
    %c0_i32_1 = arith.constant 0 : i32
    return %arg0, %c0_i32, %c0_i32_0 : i32, i32, i32
  }
  func.func @transform_1(%arg0: i32) -> (i32, i32, i32) {
    %c0_i32 = arith.constant 0 : i32
    %c0_i32_0 = arith.constant 0 : i32
    %c0_i32_1 = arith.constant 0 : i32
    return %arg0, %c0_i32, %c0_i32_0 : i32, i32, i32
  }
  func.func @transform_2(%arg0: i32) -> (i32, i32, i32) {
    %c0_i32 = arith.constant 0 : i32
    %c0_i32_0 = arith.constant 0 : i32
    %c0_i32_1 = arith.constant 0 : i32
    return %arg0, %c0_i32, %c0_i32_0 : i32, i32, i32
  }
  func.func @transform_3(%arg0: i32) -> (i32, i32) {
    %c0_i32 = arith.constant 0 : i32
    %c0_i32_0 = arith.constant 0 : i32
    %c0_i32_1 = arith.constant 0 : i32
    return %c0_i32, %c0_i32_0 : i32, i32
  }
  func.func @transform_4(%arg0: i32) -> (i32, i32) {
    %c0_i32 = arith.constant 0 : i32
    %c0_i32_0 = arith.constant 0 : i32
    %c0_i32_1 = arith.constant 0 : i32
    return %c0_i32, %c0_i32_0 : i32, i32
  }
  func.func @transform_5(%arg0: i32) -> (i32, i32) {
    %c0_i32 = arith.constant 0 : i32
    %c0_i32_0 = arith.constant 0 : i32
    %c0_i32_1 = arith.constant 0 : i32
    return %c0_i32, %c0_i32_0 : i32, i32
  }
  func.func @transform_6(%arg0: i32) -> (i32, i32) {
    %c0_i32 = arith.constant 0 : i32
    %c0_i32_0 = arith.constant 0 : i32
    %c0_i32_1 = arith.constant 0 : i32
    return %c0_i32, %c0_i32_0 : i32, i32
  }
  func.func @transform_7(%arg0: i32) -> (i32, i32) {
    %c0_i32 = arith.constant 0 : i32
    %c0_i32_0 = arith.constant 0 : i32
    %c0_i32_1 = arith.constant 0 : i32
    return %c0_i32, %c0_i32_0 : i32, i32
  }
  func.func @transform_8(%arg0: i32) -> (i32, i32) {
    %c0_i32 = arith.constant 0 : i32
    %c0_i32_0 = arith.constant 0 : i32
    %c0_i32_1 = arith.constant 0 : i32
    return %c0_i32, %c0_i32_0 : i32, i32
  }
  func.func @transform_9(%arg0: i32) -> (i32, i32) {
    %c0_i32 = arith.constant 0 : i32
    %c0_i32_0 = arith.constant 0 : i32
    %c0_i32_1 = arith.constant 0 : i32
    return %c0_i32, %c0_i32_0 : i32, i32
  }
  func.func @transform_10(%arg0: i32) -> (i32, i32) {
    %c0_i32 = arith.constant 0 : i32
    %c0_i32_0 = arith.constant 0 : i32
    %c0_i32_1 = arith.constant 0 : i32
    return %c0_i32, %c0_i32_0 : i32, i32
  }
  func.func @transform_11(%arg0: i32) -> (i32, i32, i32) {
    %c0_i32 = arith.constant 0 : i32
    %c0_i32_0 = arith.constant 0 : i32
    %c0_i32_1 = arith.constant 0 : i32
    return %arg0, %c0_i32, %c0_i32_0 : i32, i32, i32
  }
  func.func @transform_12(%arg0: i32) -> (i32, i32, i32) {
    %c0_i32 = arith.constant 0 : i32
    %c0_i32_0 = arith.constant 0 : i32
    %c0_i32_1 = arith.constant 0 : i32
    return %arg0, %c0_i32, %c0_i32_0 : i32, i32, i32
  }
  func.func @transform_13(%arg0: i32) -> (i32, i32, i32) {
    %c0_i32 = arith.constant 0 : i32
    %c0_i32_0 = arith.constant 0 : i32
    %c0_i32_1 = arith.constant 0 : i32
    return %arg0, %c0_i32, %c0_i32_0 : i32, i32, i32
  }
  func.func @transform_14(%arg0: i32) -> (i32, i32, i32) {
    %c0_i32 = arith.constant 0 : i32
    %c0_i32_0 = arith.constant 0 : i32
    %c0_i32_1 = arith.constant 0 : i32
    return %arg0, %c0_i32, %c0_i32_0 : i32, i32, i32
  }
}

</mosaic_0001>

<llo_original>
// kernel: rl_routing_forward.1
$region0: #{rl_routing_forward.1}
  #allocation0 [shape = 'u32[]', space=smem, size = 0x4, offset = 0x4, fixed_abs, tag = 'smem constant byte address 0x4 - core index']
  #allocation1 [shape = 'u32[144,128]{1,0:T(1,128)}', space=vmem, size = 0x12000, scoped, tag = 'internal scratch']
  #allocation2 [shape = 'f32[1,128]{1,0:T(1,128)}', space=vmem, size = 0x200, scoped, tag = 'scratch operand']
  #allocation3 [shape = 'f32[3,1,128]{2,1,0:T(1,128)}', space=vmem, size = 0x600, scoped, tag = 'scratch operand']
  %s0 = inlined_call_operand.vmem [shape: bf16[2,128,128], index: 0, kind: input, shape index: {}]
  %s1 = inlined_call_operand.vmem [shape: bf16[2,128,4], index: 1, kind: input, shape index: {}]
  %s2 = inlined_call_operand.vmem [shape: f32[2,1,128], index: 2, kind: input, shape index: {}]
  %s3 = inlined_call_operand.vmem [shape: bf16[4,128], index: 3, kind: input, shape index: {}]
  %s4 = inlined_call_operand.vmem [shape: f32[1,128], index: 4, kind: input, shape index: {}]
  %s5 = inlined_call_operand.vmem [shape: bf16[128,128], index: 5, kind: input, shape index: {}]
  %s6 = inlined_call_operand.vmem [shape: f32[1,128], index: 6, kind: input, shape index: {}]
  %s7 = inlined_call_operand.vmem [shape: f32[128,128], index: 7, kind: input, shape index: {}]
  %s8 = inlined_call_operand.vmem [shape: f32[1,128], index: 8, kind: input, shape index: {}]
  %s9 = inlined_call_operand.vmem [shape: f32[128,256], index: 9, kind: input, shape index: {}]
  %s10 = inlined_call_operand.vmem [shape: f32[1,128], index: 10, kind: input, shape index: {}]
  %s11 = inlined_call_operand.vmem [shape: f32[2,128,128], index: 11, kind: output, shape index: {0}]
  %s12 = inlined_call_operand.hbm [shape: f32[2,1,128], index: 12, kind: output, shape index: {1}]
  %s13 = inlined_call_operand.hbm [shape: f32[2,8,128], index: 13, kind: output, shape index: {2}]
  %s14 = inlined_call_operand.vmem [shape: s32[2,8,1], index: 14, kind: output, shape index: {3}]
  %15 = xla_tuple %s11, %s12, %s13, %s14
  %s16 = sld [smem:[#allocation0]]
  $region108: #{rl_routing_forward.1} parent=0
    _
  %s18 = ssub.s32 1, %s16
  %s19 = scalar_select 0, %s18, %s16
  $region1: #{rl_routing_forward.1} parent=0
    #allocation4 [shape = 'u8[1024]{0}', space=vmem, size = 0x400, scoped, tag = 'output window, operand 1']
    #allocation5 [shape = 's32[2]{0}', space=sflag, size = 0x8, scoped, tag = 'scoped memory for rl_routing_forward.1']
    #allocation6 [shape = 'u8[8192]{0}', space=vmem, size = 0x2000, scoped, tag = 'output window, operand 2']
    #allocation7 [shape = 's32[2]{0}', space=sflag, size = 0x8, scoped, tag = 'scoped memory for rl_routing_forward.1']
    %20 = vsyncpa [#allocation5], 0
    %s21 = scalar_lea.sflag [#allocation5], 1
    %22 = vsyncpa %s21, 0
    %23 = vsyncpa [#allocation7], 0
    %s24 = scalar_lea.sflag [#allocation7], 1
    %25 = vsyncpa %s24, 0
    loop: start=0, step=1, limit=4
    $region2: #{rl_routing_forward.1} parent=1 // loop_pre_header
      _
    $region3: #{rl_routing_forward.1} parent=1 // loop_header
      %s27 = sphi 0, %s31
      %p28 = scmp.ge.s32.totalorder %s27, 4
      %s37 = sphi 0, %s39
      %s40 = sphi 0, %s37
      %s41 = sphi 0, %s40
      %s57 = sphi 0, %s41
      %s63 = sphi 0, %s65
      %s66 = sphi 0, %s63
      %s67 = sphi 0, %s66
      %s83 = sphi 0, %s67
      %s89 = sphi 0, %s91
      %s92 = sphi 0, %s89
      %s93 = sphi 0, %s92
      %s109 = sphi 0, %s93
      %s113 = sphi 0, %s113
      %s115 = sphi 0, %s113
      %s116 = sphi 0, %s115
      %s130 = sphi 0, %s116
      %s134 = sphi 0, %s134
      %s136 = sphi 0, %s134
      %s137 = sphi 0, %s136
      %s151 = sphi 0, %s137
      %s155 = sphi 0, %s155
      %s157 = sphi 0, %s155
      %s158 = sphi 0, %s157
      %s172 = sphi 0, %s158
      %s176 = sphi 0, %s176
      %s178 = sphi 0, %s176
      %s179 = sphi 0, %s178
      %s193 = sphi 0, %s179
      %s197 = sphi 0, %s197
      %s199 = sphi 0, %s197
      %s200 = sphi 0, %s199
      %s214 = sphi 0, %s200
      %s218 = sphi 0, %s218
      %s220 = sphi 0, %s218
      %s221 = sphi 0, %s220
      %s235 = sphi 0, %s221
      %s239 = sphi 0, %s239
      %s241 = sphi 0, %s239
      %s242 = sphi 0, %s241
      %s256 = sphi 0, %s242
      %s260 = sphi 0, %s260
      %s262 = sphi 0, %s260
      %s263 = sphi 0, %s262
      %s277 = sphi 0, %s263
      %s283 = sphi 0, %s285
      %s286 = sphi 0, %s283
      %s287 = sphi 0, %s286
      %s303 = sphi 0, %s287
      %s309 = sphi 0, %s311
      %s312 = sphi 0, %s309
      %s313 = sphi 0, %s312
      %s329 = sphi 0, %s313
      %s335 = sphi 0, %s337
      %s338 = sphi 0, %s335
      %s339 = sphi 0, %s338
      %s355 = sphi 0, %s339
      %s361 = sphi 0, %s363
      %s364 = sphi 0, %s361
      %s365 = sphi 0, %s364
      %s381 = sphi 0, %s365
    $region4: #{rl_routing_forward.1} parent=1 // loop_header_branch
      %30 = sbr.rel (%p28) target = $region8
    $region5: #{rl_routing_forward.1} parent=1 // loop_body
      %s32 = ssub.s32 %s27, 1
      %s33 = ssub.s32 %s27, 2
      %s34 = sadd.s32 %s27, 1
      %s35 = ssub.s32 %s27, %s34
      %p36 = scmp.eq.s32.totalorder %s35, 0
      %s38 = sadd.s32 %s37, 1
      %s39 = scalar_select %p36, %s37, %s38
      %p42 = pneg %p36
      %p43 = scmp.eq.s32.totalorder %s27, 1
      %p44 = por %p42, %p43
      %p45 = scmp.ne.s32.totalorder %s37, %s40
      %p46 = scmp.eq.s32.totalorder %s27, 0
      %p47 = por %p45, %p46
      %p48 = scmp.ne.s32.totalorder %s37, %s40
      %p49 = scmp.eq.s32.totalorder %s32, 1
      %p50 = por %p48, %p49
      %p51 = scmp.ne.s32.totalorder %s40, %s41
      %p52 = scmp.eq.s32.totalorder %s32, 0
      %p53 = por %p51, %p52
      %p54 = scmp.ne.s32.totalorder %s40, %s41
      %p55 = scmp.eq.s32.totalorder %s33, 1
      %p56 = por %p54, %p55
      %p58 = scmp.ne.s32.totalorder %s41, %s57
      %p59 = scmp.eq.s32.totalorder %s33, 0
      %p60 = por %p58, %p59
      %s61 = ssub.s32 %s27, %s34
      %p62 = scmp.eq.s32.totalorder %s61, 0
      %s64 = sadd.s32 %s63, 1
      %s65 = scalar_select %p62, %s63, %s64
      %p68 = pneg %p62
      %p69 = scmp.eq.s32.totalorder %s27, 1
      %p70 = por %p68, %p69
      %p71 = scmp.ne.s32.totalorder %s63, %s66
      %p72 = scmp.eq.s32.totalorder %s27, 0
      %p73 = por %p71, %p72
      %p74 = scmp.ne.s32.totalorder %s63, %s66
      %p75 = scmp.eq.s32.totalorder %s32, 1
      %p76 = por %p74, %p75
      %p77 = scmp.ne.s32.totalorder %s66, %s67
      %p78 = scmp.eq.s32.totalorder %s32, 0
      %p79 = por %p77, %p78
      %p80 = scmp.ne.s32.totalorder %s66, %s67
      %p81 = scmp.eq.s32.totalorder %s33, 1
      %p82 = por %p80, %p81
      %p84 = scmp.ne.s32.totalorder %s67, %s83
      %p85 = scmp.eq.s32.totalorder %s33, 0
      %p86 = por %p84, %p85
      %s87 = ssub.s32 %s27, %s34
      %p88 = scmp.eq.s32.totalorder %s87, 0
      %s90 = sadd.s32 %s89, 1
      %s91 = scalar_select %p88, %s89, %s90
      %p94 = pneg %p88
      %p95 = scmp.eq.s32.totalorder %s27, 1
      %p96 = por %p94, %p95
      %p97 = scmp.ne.s32.totalorder %s89, %s92
      %p98 = scmp.eq.s32.totalorder %s27, 0
      %p99 = por %p97, %p98
      %p100 = scmp.ne.s32.totalorder %s89, %s92
      %p101 = scmp.eq.s32.totalorder %s32, 1
      %p102 = por %p100, %p101
      %p103 = scmp.ne.s32.totalorder %s92, %s93
      %p104 = scmp.eq.s32.totalorder %s32, 0
      %p105 = por %p103, %p104
      %p106 = scmp.ne.s32.totalorder %s92, %s93
      %p107 = scmp.eq.s32.totalorder %s33, 1
      %p108 = por %p106, %p107
      %p110 = scmp.ne.s32.totalorder %s93, %s109
      %p111 = scmp.eq.s32.totalorder %s33, 0
      %p112 = por %p110, %p111
      %s114 = sadd.s32 %s113, 1
      %p117 = scmp.eq.s32.totalorder %s27, 1
      %p118 = scmp.ne.s32.totalorder %s113, %s115
      %p119 = scmp.eq.s32.totalorder %s27, 0
      %p120 = por %p118, %p119
      %p121 = scmp.ne.s32.totalorder %s113, %s115
      %p122 = scmp.eq.s32.totalorder %s32, 1
      %p123 = por %p121, %p122
      %p124 = scmp.ne.s32.totalorder %s115, %s116
      %p125 = scmp.eq.s32.totalorder %s32, 0
      %p126 = por %p124, %p125
      %p127 = scmp.ne.s32.totalorder %s115, %s116
      %p128 = scmp.eq.s32.totalorder %s33, 1
      %p129 = por %p127, %p128
      %p131 = scmp.ne.s32.totalorder %s116, %s130
      %p132 = scmp.eq.s32.totalorder %s33, 0
      %p133 = por %p131, %p132
      %s135 = sadd.s32 %s134, 1
      %p138 = scmp.eq.s32.totalorder %s27, 1
      %p139 = scmp.ne.s32.totalorder %s134, %s136
      %p140 = scmp.eq.s32.totalorder %s27, 0
      %p141 = por %p139, %p140
      %p142 = scmp.ne.s32.totalorder %s134, %s136
      %p143 = scmp.eq.s32.totalorder %s32, 1
      %p144 = por %p142, %p143
      %p145 = scmp.ne.s32.totalorder %s136, %s137
      %p146 = scmp.eq.s32.totalorder %s32, 0
      %p147 = por %p145, %p146
      %p148 = scmp.ne.s32.totalorder %s136, %s137
      %p149 = scmp.eq.s32.totalorder %s33, 1
      %p150 = por %p148, %p149
      %p152 = scmp.ne.s32.totalorder %s137, %s151
      %p153 = scmp.eq.s32.totalorder %s33, 0
      %p154 = por %p152, %p153
      %s156 = sadd.s32 %s155, 1
      %p159 = scmp.eq.s32.totalorder %s27, 1
      %p160 = scmp.ne.s32.totalorder %s155, %s157
      %p161 = scmp.eq.s32.totalorder %s27, 0
      %p162 = por %p160, %p161
      %p163 = scmp.ne.s32.totalorder %s155, %s157
      %p164 = scmp.eq.s32.totalorder %s32, 1
      %p165 = por %p163, %p164
      %p166 = scmp.ne.s32.totalorder %s157, %s158
      %p167 = scmp.eq.s32.totalorder %s32, 0
      %p168 = por %p166, %p167
      %p169 = scmp.ne.s32.totalorder %s157, %s158
      %p170 = scmp.eq.s32.totalorder %s33, 1
      %p171 = por %p169, %p170
      %p173 = scmp.ne.s32.totalorder %s158, %s172
      %p174 = scmp.eq.s32.totalorder %s33, 0
      %p175 = por %p173, %p174
      %s177 = sadd.s32 %s176, 1
      %p180 = scmp.eq.s32.totalorder %s27, 1
      %p181 = scmp.ne.s32.totalorder %s176, %s178
      %p182 = scmp.eq.s32.totalorder %s27, 0
      %p183 = por %p181, %p182
      %p184 = scmp.ne.s32.totalorder %s176, %s178
      %p185 = scmp.eq.s32.totalorder %s32, 1
      %p186 = por %p184, %p185
      %p187 = scmp.ne.s32.totalorder %s178, %s179
      %p188 = scmp.eq.s32.totalorder %s32, 0
      %p189 = por %p187, %p188
      %p190 = scmp.ne.s32.totalorder %s178, %s179
      %p191 = scmp.eq.s32.totalorder %s33, 1
      %p192 = por %p190, %p191
      %p194 = scmp.ne.s32.totalorder %s179, %s193
      %p195 = scmp.eq.s32.totalorder %s33, 0
      %p196 = por %p194, %p195
      %s198 = sadd.s32 %s197, 1
      %p201 = scmp.eq.s32.totalorder %s27, 1
      %p202 = scmp.ne.s32.totalorder %s197, %s199
      %p203 = scmp.eq.s32.totalorder %s27, 0
      %p204 = por %p202, %p203
      %p205 = scmp.ne.s32.totalorder %s197, %s199
      %p206 = scmp.eq.s32.totalorder %s32, 1
      %p207 = por %p205, %p206
      %p208 = scmp.ne.s32.totalorder %s199, %s200
      %p209 = scmp.eq.s32.totalorder %s32, 0
      %p210 = por %p208, %p209
      %p211 = scmp.ne.s32.totalorder %s199, %s200
      %p212 = scmp.eq.s32.totalorder %s33, 1
      %p213 = por %p211, %p212
      %p215 = scmp.ne.s32.totalorder %s200, %s214
      %p216 = scmp.eq.s32.totalorder %s33, 0
      %p217 = por %p215, %p216
      %s219 = sadd.s32 %s218, 1
      %p222 = scmp.eq.s32.totalorder %s27, 1
      %p223 = scmp.ne.s32.totalorder %s218, %s220
      %p224 = scmp.eq.s32.totalorder %s27, 0
      %p225 = por %p223, %p224
      %p226 = scmp.ne.s32.totalorder %s218, %s220
      %p227 = scmp.eq.s32.totalorder %s32, 1
      %p228 = por %p226, %p227
      %p229 = scmp.ne.s32.totalorder %s220, %s221
      %p230 = scmp.eq.s32.totalorder %s32, 0
      %p231 = por %p229, %p230
      %p232 = scmp.ne.s32.totalorder %s220, %s221
      %p233 = scmp.eq.s32.totalorder %s33, 1
      %p234 = por %p232, %p233
      %p236 = scmp.ne.s32.totalorder %s221, %s235
      %p237 = scmp.eq.s32.totalorder %s33, 0
      %p238 = por %p236, %p237
      %s240 = sadd.s32 %s239, 1
      %p243 = scmp.eq.s32.totalorder %s27, 1
      %p244 = scmp.ne.s32.totalorder %s239, %s241
      %p245 = scmp.eq.s32.totalorder %s27, 0
      %p246 = por %p244, %p245
      %p247 = scmp.ne.s32.totalorder %s239, %s241
      %p248 = scmp.eq.s32.totalorder %s32, 1
      %p249 = por %p247, %p248
      %p250 = scmp.ne.s32.totalorder %s241, %s242
      %p251 = scmp.eq.s32.totalorder %s32, 0
      %p252 = por %p250, %p251
      %p253 = scmp.ne.s32.totalorder %s241, %s242
      %p254 = scmp.eq.s32.totalorder %s33, 1
      %p255 = por %p253, %p254
      %p257 = scmp.ne.s32.totalorder %s242, %s256
      %p258 = scmp.eq.s32.totalorder %s33, 0
      %p259 = por %p257, %p258
      %s261 = sadd.s32 %s260, 1
      %p264 = scmp.eq.s32.totalorder %s27, 1
      %p265 = scmp.ne.s32.totalorder %s260, %s262
      %p266 = scmp.eq.s32.totalorder %s27, 0
      %p267 = por %p265, %p266
      %p268 = scmp.ne.s32.totalorder %s260, %s262
      %p269 = scmp.eq.s32.totalorder %s32, 1
      %p270 = por %p268, %p269
      %p271 = scmp.ne.s32.totalorder %s262, %s263
      %p272 = scmp.eq.s32.totalorder %s32, 0
      %p273 = por %p271, %p272
      %p274 = scmp.ne.s32.totalorder %s262, %s263
      %p275 = scmp.eq.s32.totalorder %s33, 1
      %p276 = por %p274, %p275
      %p278 = scmp.ne.s32.totalorder %s263, %s277
      %p279 = scmp.eq.s32.totalorder %s33, 0
      %p280 = por %p278, %p279
      %s281 = ssub.s32 %s27, %s34
      %p282 = scmp.eq.s32.totalorder %s281, 0
      %s284 = sadd.s32 %s283, 1
      %s285 = scalar_select %p282, %s283, %s284
      %p288 = pneg %p282
      %p289 = scmp.eq.s32.totalorder %s27, 1
      %p290 = por %p288, %p289
      %p291 = scmp.ne.s32.totalorder %s283, %s286
      %p292 = scmp.eq.s32.totalorder %s27, 0
      %p293 = por %p291, %p292
      %p294 = scmp.ne.s32.totalorder %s283, %s286
      %p295 = scmp.eq.s32.totalorder %s32, 1
      %p296 = por %p294, %p295
      %p297 = scmp.ne.s32.totalorder %s286, %s287
      %p298 = scmp.eq.s32.totalorder %s32, 0
      %p299 = por %p297, %p298
      %p300 = scmp.ne.s32.totalorder %s286, %s287
      %p301 = scmp.eq.s32.totalorder %s33, 1
      %p302 = por %p300, %p301
      %p304 = scmp.ne.s32.totalorder %s287, %s303
      %p305 = scmp.eq.s32.totalorder %s33, 0
      %p306 = por %p304, %p305
      %s307 = ssub.s32 %s27, %s34
      %p308 = scmp.eq.s32.totalorder %s307, 0
      %s310 = sadd.s32 %s309, 1
      %s311 = scalar_select %p308, %s309, %s310
      %p314 = pneg %p308
      %p315 = scmp.eq.s32.totalorder %s27, 1
      %p316 = por %p314, %p315
      %p317 = scmp.ne.s32.totalorder %s309, %s312
      %p318 = scmp.eq.s32.totalorder %s27, 0
      %p319 = por %p317, %p318
      %p320 = scmp.ne.s32.totalorder %s309, %s312
      %p321 = scmp.eq.s32.totalorder %s32, 1
      %p322 = por %p320, %p321
      %p323 = scmp.ne.s32.totalorder %s312, %s313
      %p324 = scmp.eq.s32.totalorder %s32, 0
      %p325 = por %p323, %p324
      %p326 = scmp.ne.s32.totalorder %s312, %s313
      %p327 = scmp.eq.s32.totalorder %s33, 1
      %p328 = por %p326, %p327
      %p330 = scmp.ne.s32.totalorder %s313, %s329
      %p331 = scmp.eq.s32.totalorder %s33, 0
      %p332 = por %p330, %p331
      %s333 = ssub.s32 %s27, %s34
      %p334 = scmp.eq.s32.totalorder %s333, 0
      %s336 = sadd.s32 %s335, 1
      %s337 = scalar_select %p334, %s335, %s336
      %p340 = pneg %p334
      %p341 = scmp.eq.s32.totalorder %s27, 1
      %p342 = por %p340, %p341
      %p343 = scmp.ne.s32.totalorder %s335, %s338
      %p344 = scmp.eq.s32.totalorder %s27, 0
      %p345 = por %p343, %p344
      %p346 = scmp.ne.s32.totalorder %s335, %s338
      %p347 = scmp.eq.s32.totalorder %s32, 1
      %p348 = por %p346, %p347
      %p349 = scmp.ne.s32.totalorder %s338, %s339
      %p350 = scmp.eq.s32.totalorder %s32, 0
      %p351 = por %p349, %p350
      %p352 = scmp.ne.s32.totalorder %s338, %s339
      %p353 = scmp.eq.s32.totalorder %s33, 1
      %p354 = por %p352, %p353
      %p356 = scmp.ne.s32.totalorder %s339, %s355
      %p357 = scmp.eq.s32.totalorder %s33, 0
      %p358 = por %p356, %p357
      %s359 = ssub.s32 %s27, %s34
      %p360 = scmp.eq.s32.totalorder %s359, 0
      %s362 = sadd.s32 %s361, 1
      %s363 = scalar_select %p360, %s361, %s362
      %p366 = pneg %p360
      %p367 = scmp.eq.s32.totalorder %s27, 1
      %p368 = por %p366, %p367
      %p369 = scmp.ne.s32.totalorder %s361, %s364
      %p370 = scmp.eq.s32.totalorder %s27, 0
      %p371 = por %p369, %p370
      %p372 = scmp.ne.s32.totalorder %s361, %s364
      %p373 = scmp.eq.s32.totalorder %s32, 1
      %p374 = por %p372, %p373
      %p375 = scmp.ne.s32.totalorder %s364, %s365
      %p376 = scmp.eq.s32.totalorder %s32, 0
      %p377 = por %p375, %p376
      %p378 = scmp.ne.s32.totalorder %s364, %s365
      %p379 = scmp.eq.s32.totalorder %s33, 1
      %p380 = por %p378, %p379
      %p382 = scmp.ne.s32.totalorder %s365, %s381
      %p383 = scmp.eq.s32.totalorder %s33, 0
      %p384 = por %p382, %p383
      %p385 = scmp.le.s32.totalorder 1, %s27
      %p386 = scmp.lt.s32.totalorder %s27, 3
      %p387 = pnand %p385, %p386
      %p388 = pneg %p387
      // Predicated region
      $region9: #{rl_routing_forward.1} parent=5 // pred_check
        _
      $region10: #{rl_routing_forward.1} parent=5 // pred_check_branch
        %390 = sbr.rel (%p387) target = $region12
      $region11: #{rl_routing_forward.1} parent=5 // pred_region
        %s391 = ssub.s32 %s27, 1
        // Predicated region
        $region13: #{rl_routing_forward.1} parent=11 // pred_check
          %p392 = pneg %p126
        $region14: #{rl_routing_forward.1} parent=11 // pred_check_branch
          %394 = sbr.rel (%p392) target = $region16
        $region15: #{rl_routing_forward.1} parent=11 // pred_region
          _
        $region16: #{rl_routing_forward.1} parent=11 // pred_fallthru
          _
        // Predicated region
        $region17: #{rl_routing_forward.1} parent=11 // pred_check
          %p395 = pneg %p147
        $region18: #{rl_routing_forward.1} parent=11 // pred_check_branch
          %397 = sbr.rel (%p395) target = $region20
        $region19: #{rl_routing_forward.1} parent=11 // pred_region
          _
        $region20: #{rl_routing_forward.1} parent=11 // pred_fallthru
          _
        // Predicated region
        $region21: #{rl_routing_forward.1} parent=11 // pred_check
          %p398 = pneg %p168
        $region22: #{rl_routing_forward.1} parent=11 // pred_check_branch
          %400 = sbr.rel (%p398) target = $region24
        $region23: #{rl_routing_forward.1} parent=11 // pred_region
          _
        $region24: #{rl_routing_forward.1} parent=11 // pred_fallthru
          _
        // Predicated region
        $region25: #{rl_routing_forward.1} parent=11 // pred_check
          %p401 = pneg %p189
        $region26: #{rl_routing_forward.1} parent=11 // pred_check_branch
          %403 = sbr.rel (%p401) target = $region28
        $region27: #{rl_routing_forward.1} parent=11 // pred_region
          _
        $region28: #{rl_routing_forward.1} parent=11 // pred_fallthru
          _
        // Predicated region
        $region29: #{rl_routing_forward.1} parent=11 // pred_check
          %p404 = pneg %p210
        $region30: #{rl_routing_forward.1} parent=11 // pred_check_branch
          %406 = sbr.rel (%p404) target = $region32
        $region31: #{rl_routing_forward.1} parent=11 // pred_region
          _
        $region32: #{rl_routing_forward.1} parent=11 // pred_fallthru
          _
        // Predicated region
        $region33: #{rl_routing_forward.1} parent=11 // pred_check
          %p407 = pneg %p231
        $region34: #{rl_routing_forward.1} parent=11 // pred_check_branch
          %409 = sbr.rel (%p407) target = $region36
        $region35: #{rl_routing_forward.1} parent=11 // pred_region
          _
        $region36: #{rl_routing_forward.1} parent=11 // pred_fallthru
          _
        // Predicated region
        $region37: #{rl_routing_forward.1} parent=11 // pred_check
          %p410 = pneg %p252
        $region38: #{rl_routing_forward.1} parent=11 // pred_check_branch
          %412 = sbr.rel (%p410) target = $region40
        $region39: #{rl_routing_forward.1} parent=11 // pred_region
          _
        $region40: #{rl_routing_forward.1} parent=11 // pred_fallthru
          _
        // Predicated region
        $region41: #{rl_routing_forward.1} parent=11 // pred_check
          %p413 = pneg %p273
        $region42: #{rl_routing_forward.1} parent=11 // pred_check_branch
          %415 = sbr.rel (%p413) target = $region44
        $region43: #{rl_routing_forward.1} parent=11 // pred_region
          _
        $region44: #{rl_routing_forward.1} parent=11 // pred_fallthru
          _
      $region12: #{rl_routing_forward.1} parent=5 // pred_fallthru
        _
      %p416 = scmp.lt.s32.totalorder %s27, 2
      // Predicated region
      $region45: #{rl_routing_forward.1} parent=5 // pred_check
        %p417 = pneg %p416
      $region46: #{rl_routing_forward.1} parent=5 // pred_check_branch
        %419 = sbr.rel (%p417) target = $region48
      $region47: #{rl_routing_forward.1} parent=5 // pred_region
        // Predicated region
        $region49: #{rl_routing_forward.1} parent=47 // pred_check
          %p420 = pneg %p47
        $region50: #{rl_routing_forward.1} parent=47 // pred_check_branch
          %422 = sbr.rel (%p420) target = $region52
        $region51: #{rl_routing_forward.1} parent=47 // pred_region
          %p423 = scmp.lt.s32.totalorder %s27, 1
          %s424 = scalar_select %p423, %s27, 1
          %s425 = smul.addr %s424, 16
          %s426 = smul.addr %s425, 4
          %s427 = scalar_lea.vmem %s0, %s426
        $region52: #{rl_routing_forward.1} parent=47 // pred_fallthru
          _
        // Predicated region
        $region53: #{rl_routing_forward.1} parent=47 // pred_check
          %p428 = pneg %p73
        $region54: #{rl_routing_forward.1} parent=47 // pred_check_branch
          %430 = sbr.rel (%p428) target = $region56
        $region55: #{rl_routing_forward.1} parent=47 // pred_region
          %p431 = scmp.lt.s32.totalorder %s27, 1
          %s432 = scalar_select %p431, %s27, 1
          %s433 = smul.addr %s432, 16
          %s434 = smul.addr %s433, 4
          %s435 = scalar_lea.vmem %s1, %s434
        $region56: #{rl_routing_forward.1} parent=47 // pred_fallthru
          _
        // Predicated region
        $region57: #{rl_routing_forward.1} parent=47 // pred_check
          %p436 = pneg %p99
        $region58: #{rl_routing_forward.1} parent=47 // pred_check_branch
          %438 = sbr.rel (%p436) target = $region60
        $region59: #{rl_routing_forward.1} parent=47 // pred_region
          %p439 = scmp.lt.s32.totalorder %s27, 1
          %s440 = scalar_select %p439, %s27, 1
          %s441 = scalar_lea.vmem %s2, %s440
        $region60: #{rl_routing_forward.1} parent=47 // pred_fallthru
          _
      $region48: #{rl_routing_forward.1} parent=5 // pred_fallthru
        _
      %p442 = scmp.le.s32.totalorder 1, %s27
      %p443 = scmp.lt.s32.totalorder %s27, 3
      %p444 = pnand %p442, %p443
      %p445 = pneg %p444
      // Predicated region
      $region61: #{rl_routing_forward.1} parent=5 // pred_check
        _
      $region62: #{rl_routing_forward.1} parent=5 // pred_check_branch
        %447 = sbr.rel (%p444) target = $region64
      $region63: #{rl_routing_forward.1} parent=5 // pred_region
        %s448 = ssub.s32 %s27, 1
        %p449 = scmp.lt.s32.totalorder %s32, 1
        %s450 = scalar_select %p449, %s32, 1
        %s451 = smul.addr %s450, 16
        %s452 = smul.addr %s451, 4
        %s453 = scalar_lea.vmem %s0, %s452
        %p454 = pneg %p53
        %p455 = pneg %p50
        %p456 = scmp.lt.s32.totalorder %s32, 1
        %s457 = scalar_select %p456, %s32, 1
        %s458 = smul.addr %s457, 16
        %s459 = smul.addr %s458, 4
        %s460 = scalar_lea.vmem %s1, %s459
        %p461 = pneg %p79
        %p462 = pneg %p76
        %p463 = scmp.lt.s32.totalorder %s32, 1
        %s464 = scalar_select %p463, %s32, 1
        %s465 = scalar_lea.vmem %s2, %s464
        %p466 = pneg %p105
        %p467 = pneg %p102
        %p468 = pneg %p126
        %p469 = pneg %p123
        %p470 = pneg %p147
        %p471 = pneg %p144
        %p472 = pneg %p168
        %p473 = pneg %p165
        %p474 = pneg %p189
        %p475 = pneg %p186
        %p476 = pneg %p210
        %p477 = pneg %p207
        %p478 = pneg %p231
        %p479 = pneg %p228
        %p480 = pneg %p252
        %p481 = pneg %p249
        %p482 = pneg %p273
        %p483 = pneg %p270
        %p484 = pneg %p299
        %p485 = pneg %p296
        %p486 = scmp.lt.s32.totalorder %s32, 1
        %s487 = scalar_select %p486, %s32, 1
        %s488 = smul.addr %s487, 16
        %s489 = smul.addr %s488, 8
        %s490 = scalar_lea.vmem %s11, %s489
        %p491 = pneg %p325
        %p492 = pneg %p322
        %s493 = sand.u32 %s312, 1
        %s494 = scalar_lea.sflag [#allocation5], %s493
        %s495 = sand.u32 %s312, 1
        %s496 = scalar_lea.vmem [#allocation4], %s495
        %p497 = pneg %p351
        %p498 = pneg %p348
        %s499 = sand.u32 %s338, 1
        %s500 = scalar_lea.sflag [#allocation7], %s499
        %s501 = sand.u32 %s338, 1
        %s502 = smul.addr %s501, 8
        %s503 = scalar_lea.vmem [#allocation6], %s502
        %p504 = pneg %p377
        %p505 = pneg %p374
        %p506 = scmp.lt.s32.totalorder %s32, 1
        %s507 = scalar_select %p506, %s32, 1
        %s508 = smul.addr %s507, 8
        %s509 = scalar_lea.vmem %s14, %s508
        %p510 = scmp.lt.s32.totalorder %s32, 1
        %s511 = scalar_select %p510, %s32, 1
        %s512 = smul.addr %s511, 16
        %s513 = smul.addr %s512, 4
        %s514 = scalar_lea.vmem %s0, %s513
        %p515 = scmp.lt.s32.totalorder %s32, 1
        %s516 = scalar_select %p515, %s32, 1
        %s517 = smul.addr %s516, 16
        %s518 = smul.addr %s517, 4
        %s519 = scalar_lea.vmem %s1, %s518
        %p520 = scmp.lt.s32.totalorder %s32, 1
        %s521 = scalar_select %p520, %s32, 1
        %s522 = scalar_lea.vmem %s2, %s521
        %p523 = scmp.lt.s32.totalorder %s32, 1
        %s524 = scalar_select %p523, %s32, 1
        %s525 = smul.addr %s524, 16
        %s526 = smul.addr %s525, 8
        %s527 = scalar_lea.vmem %s11, %s526
        %p528 = scmp.lt.s32.totalorder %s32, 1
        %s529 = scalar_select %p528, %s32, 1
        %s530 = smul.addr %s529, 8
        %s531 = scalar_lea.vmem %s14, %s530
        %v533 = vld [vmem:[%s514] sm:$0xf]
        %v534 = vld [vmem:[%s514 + $0x4] sm:$0xf]
        %v535 = vld [vmem:[%s514 + $0x8] sm:$0xf]
        %v536 = vld [vmem:[%s514 + $0xc] sm:$0xf]
        %v537 = vld [vmem:[%s514 + $0x10] sm:$0xf]
        %v538 = vld [vmem:[%s514 + $0x14] sm:$0xf]
        %v539 = vld [vmem:[%s514 + $0x18] sm:$0xf]
        %v540 = vld [vmem:[%s514 + $0x1c] sm:$0xf]
        %v541 = vld [vmem:[%s514 + $0x20] sm:$0xf]
        %v542 = vld [vmem:[%s514 + $0x24] sm:$0xf]
        %v543 = vld [vmem:[%s514 + $0x28] sm:$0xf]
        %v544 = vld [vmem:[%s514 + $0x2c] sm:$0xf]
        %v545 = vld [vmem:[%s514 + $0x30] sm:$0xf]
        %v546 = vld [vmem:[%s514 + $0x34] sm:$0xf]
        %v547 = vld [vmem:[%s514 + $0x38] sm:$0xf]
        %v548 = vld [vmem:[%s514 + $0x3c] sm:$0xf]
        %v549 = vld [vmem:[%s519] sm:$0xf]
        %v550 = vld [vmem:[%s519 + $0x4] sm:$0xf]
        %v551 = vld [vmem:[%s519 + $0x8] sm:$0xf]
        %v552 = vld [vmem:[%s519 + $0xc] sm:$0xf]
        %v553 = vld [vmem:[%s519 + $0x10] sm:$0xf]
        %v554 = vld [vmem:[%s519 + $0x14] sm:$0xf]
        %v555 = vld [vmem:[%s519 + $0x18] sm:$0xf]
        %v556 = vld [vmem:[%s519 + $0x1c] sm:$0xf]
        %v557 = vld [vmem:[%s519 + $0x20] sm:$0xf]
        %v558 = vld [vmem:[%s519 + $0x24] sm:$0xf]
        %v559 = vld [vmem:[%s519 + $0x28] sm:$0xf]
        %v560 = vld [vmem:[%s519 + $0x2c] sm:$0xf]
        %v561 = vld [vmem:[%s519 + $0x30] sm:$0xf]
        %v562 = vld [vmem:[%s519 + $0x34] sm:$0xf]
        %v563 = vld [vmem:[%s519 + $0x38] sm:$0xf]
        %v564 = vld [vmem:[%s519 + $0x3c] sm:$0xf]
        %v581 = vunpack.c.l.b16 %v533
        %v582 = vunpack.c.l.b16 %v534
        %v583 = vunpack.c.l.b16 %v535
        %v584 = vunpack.c.l.b16 %v536
        %v585 = vunpack.c.l.b16 %v537
        %v586 = vunpack.c.l.b16 %v538
        %v587 = vunpack.c.l.b16 %v539
        %v588 = vunpack.c.l.b16 %v540
        %v589 = vunpack.c.l.b16 %v541
        %v590 = vunpack.c.l.b16 %v542
        %v591 = vunpack.c.l.b16 %v543
        %v592 = vunpack.c.l.b16 %v544
        %v593 = vunpack.c.l.b16 %v545
        %v594 = vunpack.c.l.b16 %v546
        %v595 = vunpack.c.l.b16 %v547
        %v596 = vunpack.c.l.b16 %v548
        %v597 = vpack.c.b16 %v582, %v581
        %v598 = vpack.c.b16 %v584, %v583
        %v599 = vpack.c.b16 %v586, %v585
        %v600 = vpack.c.b16 %v588, %v587
        %v601 = vpack.c.b16 %v590, %v589
        %v602 = vpack.c.b16 %v592, %v591
        %v603 = vpack.c.b16 %v594, %v593
        %v604 = vpack.c.b16 %v596, %v595
        %v629 = vunpack.c.l.b16 %v549
        %v630 = vunpack.c.l.b16 %v550
        %v631 = vunpack.c.l.b16 %v551
        %v632 = vunpack.c.l.b16 %v552
        %v633 = vunpack.c.l.b16 %v553
        %v634 = vunpack.c.l.b16 %v554
        %v635 = vunpack.c.l.b16 %v555
        %v636 = vunpack.c.l.b16 %v556
        %v637 = vunpack.c.l.b16 %v557
        %v638 = vunpack.c.l.b16 %v558
        %v639 = vunpack.c.l.b16 %v559
        %v640 = vunpack.c.l.b16 %v560
        %v641 = vunpack.c.l.b16 %v561
        %v642 = vunpack.c.l.b16 %v562
        %v643 = vunpack.c.l.b16 %v563
        %v644 = vunpack.c.l.b16 %v564
        %v645 = vpack.c.b16 %v630, %v629
        %v646 = vpack.c.b16 %v632, %v631
        %v647 = vpack.c.b16 %v634, %v633
        %v648 = vpack.c.b16 %v636, %v635
        %v649 = vpack.c.b16 %v638, %v637
        %v650 = vpack.c.b16 %v640, %v639
        %v651 = vpack.c.b16 %v642, %v641
        %v652 = vpack.c.b16 %v644, %v643
        %661 = vmatprep.subr.bf16.mxu0 0
        %662 = vmatpush1.bf16.msra.mxu0 %v652
        %663 = vmatprep.subr.bf16.mxu0 0
        %664 = vmatpush1.bf16.msra.mxu0 %v651
        %665 = vmatprep.subr.bf16.mxu0 0
        %666 = vmatpush1.bf16.msra.mxu0 %v650
        %667 = vmatprep.subr.bf16.mxu0 0
        %668 = vmatpush1.bf16.msra.mxu0 %v649
        %669 = vmatprep.subr.bf16.mxu0 0
        %670 = vmatpush1.bf16.msra.mxu0 %v648
        %671 = vmatprep.subr.bf16.mxu0 0
        %672 = vmatpush1.bf16.msra.mxu0 %v647
        %673 = vmatprep.subr.bf16.mxu0 0
        %674 = vmatpush1.bf16.msra.mxu0 %v646
        %675 = vmatprep.subr.bf16.mxu0 0
        %676 = vmatpush1.bf16.msra.mxu0 %v645
        %677 = vmatprep.subr.bf16.mxu0 0
        %678 = vmatpush2.bf16.msra.mxu0 0
        %679 = vmatprep.subr.bf16.mxu0 0
        %680 = vmatpush2.bf16.msra.mxu0 0
        %681 = vmatprep.subr.bf16.mxu0 0
        %682 = vmatpush2.bf16.msra.mxu0 0
        %683 = vmatprep.subr.bf16.mxu0 0
        %684 = vmatpush2.bf16.msra.mxu0 0
        %685 = vmatprep.subr.bf16.mxu0 0
        %686 = vmatpush2.bf16.msra.mxu0 0
        %687 = vmatprep.subr.bf16.mxu0 0
        %688 = vmatpush2.bf16.msra.mxu0 0
        %689 = vmatprep.subr.bf16.mxu0 0
        %690 = vmatpush2.bf16.msra.mxu0 0
        %691 = vmatprep.subr.bf16.mxu0 0
        %692 = vmatpush2.bf16.msra.mxu0 0
        %693 = vmatprep.mubr.bf16.mxu0 0
        %694 = vmatmul.mubr.bf16.gmra.mxu0 %v597
        %v695 = vpop.f32.mrf.mxu0
        %v696 = vadd.f32 0.0, %v695
        %v697 = vpop.f32.mrf.mxu0
        %v698 = vpop.f32.mrf.mxu0
        %v699 = vadd.f32 0.0, %v698
        %v700 = vpop.f32.mrf.mxu0
        %701 = vmatprep.mubr.bf16.mxu0 0
        %702 = vmatmul.mubr.bf16.gmra.mxu0 %v598
        %v703 = vpop.f32.mrf.mxu0
        %v704 = vadd.f32 0.0, %v703
        %v705 = vpop.f32.mrf.mxu0
        %v706 = vpop.f32.mrf.mxu0
        %v707 = vadd.f32 0.0, %v706
        %v708 = vpop.f32.mrf.mxu0
        %709 = vmatprep.mubr.bf16.mxu0 0
        %710 = vmatmul.mubr.bf16.gmra.mxu0 %v599
        %v711 = vpop.f32.mrf.mxu0
        %v712 = vadd.f32 0.0, %v711
        %v713 = vpop.f32.mrf.mxu0
        %v714 = vpop.f32.mrf.mxu0
        %v715 = vadd.f32 0.0, %v714
        %v716 = vpop.f32.mrf.mxu0
        %717 = vmatprep.mubr.bf16.mxu0 0
        %718 = vmatmul.mubr.bf16.gmra.mxu0 %v600
        %v719 = vpop.f32.mrf.mxu0
        %v720 = vadd.f32 0.0, %v719
        %v721 = vpop.f32.mrf.mxu0
        %v722 = vpop.f32.mrf.mxu0
        %v723 = vadd.f32 0.0, %v722
        %v724 = vpop.f32.mrf.mxu0
        %725 = vmatprep.mubr.bf16.mxu0 0
        %726 = vmatmul.mubr.bf16.gmra.mxu0 %v601
        %v727 = vpop.f32.mrf.mxu0
        %v728 = vadd.f32 0.0, %v727
        %v729 = vpop.f32.mrf.mxu0
        %v730 = vpop.f32.mrf.mxu0
        %v731 = vadd.f32 0.0, %v730
        %v732 = vpop.f32.mrf.mxu0
        %733 = vmatprep.mubr.bf16.mxu0 0
        %734 = vmatmul.mubr.bf16.gmra.mxu0 %v602
        %v735 = vpop.f32.mrf.mxu0
        %v736 = vadd.f32 0.0, %v735
        %v737 = vpop.f32.mrf.mxu0
        %v738 = vpop.f32.mrf.mxu0
        %v739 = vadd.f32 0.0, %v738
        %v740 = vpop.f32.mrf.mxu0
        %741 = vmatprep.mubr.bf16.mxu0 0
        %742 = vmatmul.mubr.bf16.gmra.mxu0 %v603
        %v743 = vpop.f32.mrf.mxu0
        %v744 = vadd.f32 0.0, %v743
        %v745 = vpop.f32.mrf.mxu0
        %v746 = vpop.f32.mrf.mxu0
        %v747 = vadd.f32 0.0, %v746
        %v748 = vpop.f32.mrf.mxu0
        %749 = vmatprep.mubr.bf16.mxu0 0
        %750 = vmatmul.mubr.bf16.gmra.mxu0 %v604
        %v751 = vpop.f32.mrf.mxu0
        %v752 = vadd.f32 0.0, %v751
        %v753 = vpop.f32.mrf.mxu0
        %v754 = vpop.f32.mrf.mxu0
        %v755 = vadd.f32 0.0, %v754
        %v756 = vpop.f32.mrf.mxu0
        %757 = vdwg.mxu0
        %v758 = vpack.c.bf16 %v699, %v696
        %v759 = vpack.c.bf16 %v707, %v704
        %v760 = vpack.c.bf16 %v715, %v712
        %v761 = vpack.c.bf16 %v723, %v720
        %v762 = vpack.c.bf16 %v731, %v728
        %v763 = vpack.c.bf16 %v739, %v736
        %v764 = vpack.c.bf16 %v747, %v744
        %v765 = vpack.c.bf16 %v755, %v752
        %v766 = vld [vmem:[%s3] sm:$0x3]
        %v767 = vld [vmem:[%s4] sm:$0x1]
        %v769 = vlaneseq
        %v770 = vshrl.u32 %v769, 7
        %v771 = vsub.s32 0, %v770
        %v772 = vrot.slane %v767, %v771
        %vm774 = vcmask 31744
        %v776 = vsel %vm774, %v758, 0
        %v779 = vsel %vm774, %v759, 0
        %v782 = vsel %vm774, %v760, 0
        %v785 = vsel %vm774, %v761, 0
        %v788 = vsel %vm774, %v762, 0
        %v791 = vsel %vm774, %v763, 0
        %v794 = vsel %vm774, %v764, 0
        %v797 = vsel %vm774, %v765, 0
        %vm799 = vcmask 1041408
        %v801 = vsel %vm799, %v766, 0
        %803 = vmatprep.subr.bf16.mxu0 0
        %804 = vmatpush1.bf16.msra.mxu0 0
        %805 = vmatprep.subr.bf16.mxu0 0
        %806 = vmatpush1.bf16.msra.mxu0 0
        %807 = vmatprep.subr.bf16.mxu0 0
        %808 = vmatpush1.bf16.msra.mxu0 0
        %809 = vmatprep.subr.bf16.mxu0 0
        %810 = vmatpush1.bf16.msra.mxu0 0
        %811 = vmatprep.subr.bf16.mxu0 0
        %812 = vmatpush1.bf16.msra.mxu0 0
        %813 = vmatprep.subr.bf16.mxu0 0
        %814 = vmatpush1.bf16.msra.mxu0 0
        %815 = vmatprep.subr.bf16.mxu0 0
        %816 = vmatpush1.bf16.msra.mxu0 0
        %817 = vmatprep.subr.bf16.mxu0 0
        %818 = vmatpush1.bf16.msra.mxu0 %v801
        %819 = vmatprep.subr.bf16.mxu0 0
        %820 = vmatpush2.bf16.msra.mxu0 0
        %821 = vmatprep.subr.bf16.mxu0 0
        %822 = vmatpush2.bf16.msra.mxu0 0
        %823 = vmatprep.subr.bf16.mxu0 0
        %824 = vmatpush2.bf16.msra.mxu0 0
        %825 = vmatprep.subr.bf16.mxu0 0
        %826 = vmatpush2.bf16.msra.mxu0 0
        %827 = vmatprep.subr.bf16.mxu0 0
        %828 = vmatpush2.bf16.msra.mxu0 0
        %829 = vmatprep.subr.bf16.mxu0 0
        %830 = vmatpush2.bf16.msra.mxu0 0
        %831 = vmatprep.subr.bf16.mxu0 0
        %832 = vmatpush2.bf16.msra.mxu0 0
        %833 = vmatprep.subr.bf16.mxu0 0
        %834 = vmatpush2.bf16.msra.mxu0 0
        %835 = vmatprep.mubr.bf16.mxu0 0
        %836 = vmatmul.mubr.bf16.gmra.mxu0 %v776
        %v837 = vpop.f32.mrf.mxu0
        %v838 = vadd.f32 %v772, %v837
        %v839 = vpop.f32.mrf.mxu0
        %v840 = vpop.f32.mrf.mxu0
        %v841 = vadd.f32 %v772, %v840
        %v842 = vpop.f32.mrf.mxu0
        %843 = vmatprep.mubr.bf16.mxu0 0
        %844 = vmatmul.mubr.bf16.gmra.mxu0 %v779
        %v845 = vpop.f32.mrf.mxu0
        %v846 = vadd.f32 %v772, %v845
        %v847 = vpop.f32.mrf.mxu0
        %v848 = vpop.f32.mrf.mxu0
        %v849 = vadd.f32 %v772, %v848
        %v850 = vpop.f32.mrf.mxu0
        %851 = vmatprep.mubr.bf16.mxu0 0
        %852 = vmatmul.mubr.bf16.gmra.mxu0 %v782
        %v853 = vpop.f32.mrf.mxu0
        %v854 = vadd.f32 %v772, %v853
        %v855 = vpop.f32.mrf.mxu0
        %v856 = vpop.f32.mrf.mxu0
        %v857 = vadd.f32 %v772, %v856
        %v858 = vpop.f32.mrf.mxu0
        %859 = vmatprep.mubr.bf16.mxu0 0
        %860 = vmatmul.mubr.bf16.gmra.mxu0 %v785
        %v861 = vpop.f32.mrf.mxu0
        %v862 = vadd.f32 %v772, %v861
        %v863 = vpop.f32.mrf.mxu0
        %v864 = vpop.f32.mrf.mxu0
        %v865 = vadd.f32 %v772, %v864
        %v866 = vpop.f32.mrf.mxu0
        %867 = vmatprep.mubr.bf16.mxu0 0
        %868 = vmatmul.mubr.bf16.gmra.mxu0 %v788
        %v869 = vpop.f32.mrf.mxu0
        %v870 = vadd.f32 %v772, %v869
        %v871 = vpop.f32.mrf.mxu0
        %v872 = vpop.f32.mrf.mxu0
        %v873 = vadd.f32 %v772, %v872
        %v874 = vpop.f32.mrf.mxu0
        %875 = vmatprep.mubr.bf16.mxu0 0
        %876 = vmatmul.mubr.bf16.gmra.mxu0 %v791
        %v877 = vpop.f32.mrf.mxu0
        %v878 = vadd.f32 %v772, %v877
        %v879 = vpop.f32.mrf.mxu0
        %v880 = vpop.f32.mrf.mxu0
        %v881 = vadd.f32 %v772, %v880
        %v882 = vpop.f32.mrf.mxu0
        %883 = vmatprep.mubr.bf16.mxu0 0
        %884 = vmatmul.mubr.bf16.gmra.mxu0 %v794
        %v885 = vpop.f32.mrf.mxu0
        %v886 = vadd.f32 %v772, %v885
        %v887 = vpop.f32.mrf.mxu0
        %v888 = vpop.f32.mrf.mxu0
        %v889 = vadd.f32 %v772, %v888
        %v890 = vpop.f32.mrf.mxu0
        %891 = vmatprep.mubr.bf16.mxu0 0
        %892 = vmatmul.mubr.bf16.gmra.mxu0 %v797
        %v893 = vpop.f32.mrf.mxu0
        %v894 = vadd.f32 %v772, %v893
        %v895 = vpop.f32.mrf.mxu0
        %v896 = vpop.f32.mrf.mxu0
        %v897 = vadd.f32 %v772, %v896
        %v898 = vpop.f32.mrf.mxu0
        %899 = vdwg.mxu0
        %v900 = vmax.f32 %v838, 0.0
        %v901 = vmax.f32 %v841, 0.0
        %v902 = vmax.f32 %v846, 0.0
        %v903 = vmax.f32 %v849, 0.0
        %v904 = vmax.f32 %v854, 0.0
        %v905 = vmax.f32 %v857, 0.0
        %v906 = vmax.f32 %v862, 0.0
        %v907 = vmax.f32 %v865, 0.0
        %v908 = vmax.f32 %v870, 0.0
        %v909 = vmax.f32 %v873, 0.0
        %v910 = vmax.f32 %v878, 0.0
        %v911 = vmax.f32 %v881, 0.0
        %v912 = vmax.f32 %v886, 0.0
        %v913 = vmax.f32 %v889, 0.0
        %v914 = vmax.f32 %v894, 0.0
        %v915 = vmax.f32 %v897, 0.0
        %v916 = vpack.c.bf16 %v901, %v900
        %v917 = vpack.c.bf16 %v903, %v902
        %v918 = vpack.c.bf16 %v905, %v904
        %v919 = vpack.c.bf16 %v907, %v906
        %v920 = vpack.c.bf16 %v909, %v908
        %v921 = vpack.c.bf16 %v911, %v910
        %v922 = vpack.c.bf16 %v913, %v912
        %v923 = vpack.c.bf16 %v915, %v914
        %924 = vmatprep.subr.bf16.mxu0 0
        %925 = vmatpush1.bf16.msra.mxu0 %v923
        %926 = vmatprep.subr.bf16.mxu0 0
        %927 = vmatpush1.bf16.msra.mxu0 %v922
        %928 = vmatprep.subr.bf16.mxu0 0
        %929 = vmatpush1.bf16.msra.mxu0 %v921
        %930 = vmatprep.subr.bf16.mxu0 0
        %931 = vmatpush1.bf16.msra.mxu0 %v920
        %932 = vmatprep.subr.bf16.mxu0 0
        %933 = vmatpush1.bf16.msra.mxu0 %v919
        %934 = vmatprep.subr.bf16.mxu0 0
        %935 = vmatpush1.bf16.msra.mxu0 %v918
        %936 = vmatprep.subr.bf16.mxu0 0
        %937 = vmatpush1.bf16.msra.mxu0 %v917
        %938 = vmatprep.subr.bf16.mxu0 0
        %939 = vmatpush1.bf16.msra.mxu0 %v916
        %940 = vmatprep.subr.bf16.mxu0 0
        %941 = vmatpush2.bf16.msra.mxu0 0
        %942 = vmatprep.subr.bf16.mxu0 0
        %943 = vmatpush2.bf16.msra.mxu0 0
        %944 = vmatprep.subr.bf16.mxu0 0
        %945 = vmatpush2.bf16.msra.mxu0 0
        %946 = vmatprep.subr.bf16.mxu0 0
        %947 = vmatpush2.bf16.msra.mxu0 0
        %948 = vmatprep.subr.bf16.mxu0 0
        %949 = vmatpush2.bf16.msra.mxu0 0
        %950 = vmatprep.subr.bf16.mxu0 0
        %951 = vmatpush2.bf16.msra.mxu0 0
        %952 = vmatprep.subr.bf16.mxu0 0
        %953 = vmatpush2.bf16.msra.mxu0 0
        %954 = vmatprep.subr.bf16.mxu0 0
        %955 = vmatpush2.bf16.msra.mxu0 0
        %956 = vmatprep.mubr.bf16.mxu0 0
        %957 = vmatmul.mubr.bf16.gmra.mxu0 %v597
        %v958 = vpop.f32.mrf.mxu0
        %v959 = vadd.f32 0.0, %v958
        %v960 = vpop.f32.mrf.mxu0
        %v961 = vpop.f32.mrf.mxu0
        %v962 = vadd.f32 0.0, %v961
        %v963 = vpop.f32.mrf.mxu0
        %964 = vmatprep.mubr.bf16.mxu0 0
        %965 = vmatmul.mubr.bf16.gmra.mxu0 %v598
        %v966 = vpop.f32.mrf.mxu0
        %v967 = vadd.f32 0.0, %v966
        %v968 = vpop.f32.mrf.mxu0
        %v969 = vpop.f32.mrf.mxu0
        %v970 = vadd.f32 0.0, %v969
        %v971 = vpop.f32.mrf.mxu0
        %972 = vmatprep.mubr.bf16.mxu0 0
        %973 = vmatmul.mubr.bf16.gmra.mxu0 %v599
        %v974 = vpop.f32.mrf.mxu0
        %v975 = vadd.f32 0.0, %v974
        %v976 = vpop.f32.mrf.mxu0
        %v977 = vpop.f32.mrf.mxu0
        %v978 = vadd.f32 0.0, %v977
        %v979 = vpop.f32.mrf.mxu0
        %980 = vmatprep.mubr.bf16.mxu0 0
        %981 = vmatmul.mubr.bf16.gmra.mxu0 %v600
        %v982 = vpop.f32.mrf.mxu0
        %v983 = vadd.f32 0.0, %v982
        %v984 = vpop.f32.mrf.mxu0
        %v985 = vpop.f32.mrf.mxu0
        %v986 = vadd.f32 0.0, %v985
        %v987 = vpop.f32.mrf.mxu0
        %988 = vmatprep.mubr.bf16.mxu0 0
        %989 = vmatmul.mubr.bf16.gmra.mxu0 %v601
        %v990 = vpop.f32.mrf.mxu0
        %v991 = vadd.f32 0.0, %v990
        %v992 = vpop.f32.mrf.mxu0
        %v993 = vpop.f32.mrf.mxu0
        %v994 = vadd.f32 0.0, %v993
        %v995 = vpop.f32.mrf.mxu0
        %996 = vmatprep.mubr.bf16.mxu0 0
        %997 = vmatmul.mubr.bf16.gmra.mxu0 %v602
        %v998 = vpop.f32.mrf.mxu0
        %v999 = vadd.f32 0.0, %v998
        %v1000 = vpop.f32.mrf.mxu0
        %v1001 = vpop.f32.mrf.mxu0
        %v1002 = vadd.f32 0.0, %v1001
        %v1003 = vpop.f32.mrf.mxu0
        %1004 = vmatprep.mubr.bf16.mxu0 0
        %1005 = vmatmul.mubr.bf16.gmra.mxu0 %v603
        %v1006 = vpop.f32.mrf.mxu0
        %v1007 = vadd.f32 0.0, %v1006
        %v1008 = vpop.f32.mrf.mxu0
        %v1009 = vpop.f32.mrf.mxu0
        %v1010 = vadd.f32 0.0, %v1009
        %v1011 = vpop.f32.mrf.mxu0
        %1012 = vmatprep.mubr.bf16.mxu0 0
        %1013 = vmatmul.mubr.bf16.gmra.mxu0 %v604
        %v1014 = vpop.f32.mrf.mxu0
        %v1015 = vadd.f32 0.0, %v1014
        %v1016 = vpop.f32.mrf.mxu0
        %v1017 = vpop.f32.mrf.mxu0
        %v1018 = vadd.f32 0.0, %v1017
        %v1019 = vpop.f32.mrf.mxu0
        %1020 = vdwg.mxu0
        %v1021 = vpack.c.bf16 %v962, %v959
        %v1022 = vpack.c.bf16 %v970, %v967
        %v1023 = vpack.c.bf16 %v978, %v975
        %v1024 = vpack.c.bf16 %v986, %v983
        %v1025 = vpack.c.bf16 %v994, %v991
        %v1026 = vpack.c.bf16 %v1002, %v999
        %v1027 = vpack.c.bf16 %v1010, %v1007
        %v1028 = vpack.c.bf16 %v1018, %v1015
        %v1029 = vld [vmem:[%s5] sm:$0xf]
        %v1030 = vld [vmem:[%s5 + $0x4] sm:$0xf]
        %v1031 = vld [vmem:[%s5 + $0x8] sm:$0xf]
        %v1032 = vld [vmem:[%s5 + $0xc] sm:$0xf]
        %v1033 = vld [vmem:[%s5 + $0x10] sm:$0xf]
        %v1034 = vld [vmem:[%s5 + $0x14] sm:$0xf]
        %v1035 = vld [vmem:[%s5 + $0x18] sm:$0xf]
        %v1036 = vld [vmem:[%s5 + $0x1c] sm:$0xf]
        %v1037 = vld [vmem:[%s5 + $0x20] sm:$0xf]
        %v1038 = vld [vmem:[%s5 + $0x24] sm:$0xf]
        %v1039 = vld [vmem:[%s5 + $0x28] sm:$0xf]
        %v1040 = vld [vmem:[%s5 + $0x2c] sm:$0xf]
        %v1041 = vld [vmem:[%s5 + $0x30] sm:$0xf]
        %v1042 = vld [vmem:[%s5 + $0x34] sm:$0xf]
        %v1043 = vld [vmem:[%s5 + $0x38] sm:$0xf]
        %v1044 = vld [vmem:[%s5 + $0x3c] sm:$0xf]
        %v1045 = vld [vmem:[%s6] sm:$0x1]
        %v1047 = vlaneseq
        %v1048 = vshrl.u32 %v1047, 7
        %v1049 = vsub.s32 0, %v1048
        %v1050 = vrot.slane %v1045, %v1049
        %v1068 = vunpack.c.l.b16 %v1029
        %v1069 = vunpack.c.l.b16 %v1030
        %v1070 = vunpack.c.l.b16 %v1031
        %v1071 = vunpack.c.l.b16 %v1032
        %v1072 = vunpack.c.l.b16 %v1033
        %v1073 = vunpack.c.l.b16 %v1034
        %v1074 = vunpack.c.l.b16 %v1035
        %v1075 = vunpack.c.l.b16 %v1036
        %v1076 = vunpack.c.l.b16 %v1037
        %v1077 = vunpack.c.l.b16 %v1038
        %v1078 = vunpack.c.l.b16 %v1039
        %v1079 = vunpack.c.l.b16 %v1040
        %v1080 = vunpack.c.l.b16 %v1041
        %v1081 = vunpack.c.l.b16 %v1042
        %v1082 = vunpack.c.l.b16 %v1043
        %v1083 = vunpack.c.l.b16 %v1044
        %v1084 = vpack.c.b16 %v1069, %v1068
        %v1085 = vpack.c.b16 %v1071, %v1070
        %v1086 = vpack.c.b16 %v1073, %v1072
        %v1087 = vpack.c.b16 %v1075, %v1074
        %v1088 = vpack.c.b16 %v1077, %v1076
        %v1089 = vpack.c.b16 %v1079, %v1078
        %v1090 = vpack.c.b16 %v1081, %v1080
        %v1091 = vpack.c.b16 %v1083, %v1082
        %1100 = vmatprep.subr.bf16.mxu0 0
        %1101 = vmatpush1.bf16.msra.mxu0 %v1091
        %1102 = vmatprep.subr.bf16.mxu0 0
        %1103 = vmatpush1.bf16.msra.mxu0 %v1090
        %1104 = vmatprep.subr.bf16.mxu0 0
        %1105 = vmatpush1.bf16.msra.mxu0 %v1089
        %1106 = vmatprep.subr.bf16.mxu0 0
        %1107 = vmatpush1.bf16.msra.mxu0 %v1088
        %1108 = vmatprep.subr.bf16.mxu0 0
        %1109 = vmatpush1.bf16.msra.mxu0 %v1087
        %1110 = vmatprep.subr.bf16.mxu0 0
        %1111 = vmatpush1.bf16.msra.mxu0 %v1086
        %1112 = vmatprep.subr.bf16.mxu0 0
        %1113 = vmatpush1.bf16.msra.mxu0 %v1085
        %1114 = vmatprep.subr.bf16.mxu0 0
        %1115 = vmatpush1.bf16.msra.mxu0 %v1084
        %1116 = vmatprep.subr.bf16.mxu0 0
        %1117 = vmatpush2.bf16.msra.mxu0 0
        %1118 = vmatprep.subr.bf16.mxu0 0
        %1119 = vmatpush2.bf16.msra.mxu0 0
        %1120 = vmatprep.subr.bf16.mxu0 0
        %1121 = vmatpush2.bf16.msra.mxu0 0
        %1122 = vmatprep.subr.bf16.mxu0 0
        %1123 = vmatpush2.bf16.msra.mxu0 0
        %1124 = vmatprep.subr.bf16.mxu0 0
        %1125 = vmatpush2.bf16.msra.mxu0 0
        %1126 = vmatprep.subr.bf16.mxu0 0
        %1127 = vmatpush2.bf16.msra.mxu0 0
        %1128 = vmatprep.subr.bf16.mxu0 0
        %1129 = vmatpush2.bf16.msra.mxu0 0
        %1130 = vmatprep.subr.bf16.mxu0 0
        %1131 = vmatpush2.bf16.msra.mxu0 0
        %1132 = vmatprep.mubr.bf16.mxu0 0
        %1133 = vmatmul.mubr.bf16.gmra.mxu0 %v1021
        %v1134 = vpop.f32.mrf.mxu0
        %v1135 = vadd.f32 %v1050, %v1134
        %v1136 = vpop.f32.mrf.mxu0
        %v1137 = vpop.f32.mrf.mxu0
        %v1138 = vadd.f32 %v1050, %v1137
        %v1139 = vpop.f32.mrf.mxu0
        %1140 = vmatprep.mubr.bf16.mxu0 0
        %1141 = vmatmul.mubr.bf16.gmra.mxu0 %v1022
        %v1142 = vpop.f32.mrf.mxu0
        %v1143 = vadd.f32 %v1050, %v1142
        %v1144 = vpop.f32.mrf.mxu0
        %v1145 = vpop.f32.mrf.mxu0
        %v1146 = vadd.f32 %v1050, %v1145
        %v1147 = vpop.f32.mrf.mxu0
        %1148 = vmatprep.mubr.bf16.mxu0 0
        %1149 = vmatmul.mubr.bf16.gmra.mxu0 %v1023
        %v1150 = vpop.f32.mrf.mxu0
        %v1151 = vadd.f32 %v1050, %v1150
        %v1152 = vpop.f32.mrf.mxu0
        %v1153 = vpop.f32.mrf.mxu0
        %v1154 = vadd.f32 %v1050, %v1153
        %v1155 = vpop.f32.mrf.mxu0
        %1156 = vmatprep.mubr.bf16.mxu0 0
        %1157 = vmatmul.mubr.bf16.gmra.mxu0 %v1024
        %v1158 = vpop.f32.mrf.mxu0
        %v1159 = vadd.f32 %v1050, %v1158
        %v1160 = vpop.f32.mrf.mxu0
        %v1161 = vpop.f32.mrf.mxu0
        %v1162 = vadd.f32 %v1050, %v1161
        %v1163 = vpop.f32.mrf.mxu0
        %1164 = vmatprep.mubr.bf16.mxu0 0
        %1165 = vmatmul.mubr.bf16.gmra.mxu0 %v1025
        %v1166 = vpop.f32.mrf.mxu0
        %v1167 = vadd.f32 %v1050, %v1166
        %v1168 = vpop.f32.mrf.mxu0
        %v1169 = vpop.f32.mrf.mxu0
        %v1170 = vadd.f32 %v1050, %v1169
        %v1171 = vpop.f32.mrf.mxu0
        %1172 = vmatprep.mubr.bf16.mxu0 0
        %1173 = vmatmul.mubr.bf16.gmra.mxu0 %v1026
        %v1174 = vpop.f32.mrf.mxu0
        %v1175 = vadd.f32 %v1050, %v1174
        %v1176 = vpop.f32.mrf.mxu0
        %v1177 = vpop.f32.mrf.mxu0
        %v1178 = vadd.f32 %v1050, %v1177
        %v1179 = vpop.f32.mrf.mxu0
        %1180 = vmatprep.mubr.bf16.mxu0 0
        %1181 = vmatmul.mubr.bf16.gmra.mxu0 %v1027
        %v1182 = vpop.f32.mrf.mxu0
        %v1183 = vadd.f32 %v1050, %v1182
        %v1184 = vpop.f32.mrf.mxu0
        %v1185 = vpop.f32.mrf.mxu0
        %v1186 = vadd.f32 %v1050, %v1185
        %v1187 = vpop.f32.mrf.mxu0
        %1188 = vmatprep.mubr.bf16.mxu0 0
        %1189 = vmatmul.mubr.bf16.gmra.mxu0 %v1028
        %v1190 = vpop.f32.mrf.mxu0
        %v1191 = vadd.f32 %v1050, %v1190
        %v1192 = vpop.f32.mrf.mxu0
        %v1193 = vpop.f32.mrf.mxu0
        %v1194 = vadd.f32 %v1050, %v1193
        %v1195 = vpop.f32.mrf.mxu0
        %1196 = vdwg.mxu0
        %v1197 = vlaneseq
        %v1198 = vshrl.u32 %v1197, 7
        %v1199 = vadd.s32 %v1198, 8
        %v1200 = vadd.s32 %v1198, 16
        %v1201 = vadd.s32 %v1198, 24
        %v1202 = vadd.s32 %v1198, 32
        %v1203 = vadd.s32 %v1198, 40
        %v1204 = vadd.s32 %v1198, 48
        %v1205 = vadd.s32 %v1198, 56
        %v1206 = vadd.s32 %v1198, 64
        %v1207 = vadd.s32 %v1198, 72
        %v1208 = vadd.s32 %v1198, 80
        %v1209 = vadd.s32 %v1198, 88
        %v1210 = vadd.s32 %v1198, 96
        %v1211 = vadd.s32 %v1198, 104
        %v1212 = vadd.s32 %v1198, 112
        %v1213 = vadd.s32 %v1198, 120
        %vm1214 = vcmp.lt.s32.totalorder %v1198, 16
        %vm1215 = vcmp.lt.s32.totalorder %v1199, 16
        %vm1216 = vcmp.lt.s32.totalorder %v1200, 16
        %vm1217 = vcmp.lt.s32.totalorder %v1201, 16
        %vm1218 = vcmp.lt.s32.totalorder %v1202, 16
        %vm1219 = vcmp.lt.s32.totalorder %v1203, 16
        %vm1220 = vcmp.lt.s32.totalorder %v1204, 16
        %vm1221 = vcmp.lt.s32.totalorder %v1205, 16
        %vm1222 = vcmp.lt.s32.totalorder %v1206, 16
        %vm1223 = vcmp.lt.s32.totalorder %v1207, 16
        %vm1224 = vcmp.lt.s32.totalorder %v1208, 16
        %vm1225 = vcmp.lt.s32.totalorder %v1209, 16
        %vm1226 = vcmp.lt.s32.totalorder %v1210, 16
        %vm1227 = vcmp.lt.s32.totalorder %v1211, 16
        %vm1228 = vcmp.lt.s32.totalorder %v1212, 16
        %vm1229 = vcmp.lt.s32.totalorder %v1213, 16
        %v1230 = vsel %vm1214, 1, 0
        %v1231 = vsel %vm1215, 1, 0
        %v1232 = vsel %vm1216, 1, 0
        %v1233 = vsel %vm1217, 1, 0
        %v1234 = vsel %vm1218, 1, 0
        %v1235 = vsel %vm1219, 1, 0
        %v1236 = vsel %vm1220, 1, 0
        %v1237 = vsel %vm1221, 1, 0
        %v1238 = vsel %vm1222, 1, 0
        %v1239 = vsel %vm1223, 1, 0
        %v1240 = vsel %vm1224, 1, 0
        %v1241 = vsel %vm1225, 1, 0
        %v1242 = vsel %vm1226, 1, 0
        %v1243 = vsel %vm1227, 1, 0
        %v1244 = vsel %vm1228, 1, 0
        %v1245 = vsel %vm1229, 1, 0
        %v1246 = vcvt.s32.f32 %v1230
        %v1247 = vcvt.s32.f32 %v1231
        %v1248 = vcvt.s32.f32 %v1232
        %v1249 = vcvt.s32.f32 %v1233
        %v1250 = vcvt.s32.f32 %v1234
        %v1251 = vcvt.s32.f32 %v1235
        %v1252 = vcvt.s32.f32 %v1236
        %v1253 = vcvt.s32.f32 %v1237
        %v1254 = vcvt.s32.f32 %v1238
        %v1255 = vcvt.s32.f32 %v1239
        %v1256 = vcvt.s32.f32 %v1240
        %v1257 = vcvt.s32.f32 %v1241
        %v1258 = vcvt.s32.f32 %v1242
        %v1259 = vcvt.s32.f32 %v1243
        %v1260 = vcvt.s32.f32 %v1244
        %v1261 = vcvt.s32.f32 %v1245
        %v1262 = vmul.f32 %v1135, %v1246
        %v1263 = vmul.f32 %v1138, %v1247
        %v1264 = vmul.f32 %v1143, %v1248
        %v1265 = vmul.f32 %v1146, %v1249
        %v1266 = vmul.f32 %v1151, %v1250
        %v1267 = vmul.f32 %v1154, %v1251
        %v1268 = vmul.f32 %v1159, %v1252
        %v1269 = vmul.f32 %v1162, %v1253
        %v1270 = vmul.f32 %v1167, %v1254
        %v1271 = vmul.f32 %v1170, %v1255
        %v1272 = vmul.f32 %v1175, %v1256
        %v1273 = vmul.f32 %v1178, %v1257
        %v1274 = vmul.f32 %v1183, %v1258
        %v1275 = vmul.f32 %v1186, %v1259
        %v1276 = vmul.f32 %v1191, %v1260
        %v1277 = vmul.f32 %v1194, %v1261
        %v1278 = vadd.f32 %v1262, %v1263
        %v1279 = vadd.f32 %v1278, %v1264
        %v1280 = vadd.f32 %v1279, %v1265
        %v1281 = vadd.f32 %v1280, %v1266
        %v1282 = vadd.f32 %v1281, %v1267
        %v1283 = vadd.f32 %v1282, %v1268
        %v1284 = vadd.f32 %v1283, %v1269
        %v1285 = vadd.f32 %v1284, %v1270
        %v1286 = vadd.f32 %v1285, %v1271
        %v1287 = vadd.f32 %v1286, %v1272
        %v1288 = vadd.f32 %v1287, %v1273
        %v1289 = vadd.f32 %v1288, %v1274
        %v1290 = vadd.f32 %v1289, %v1275
        %v1291 = vadd.f32 %v1290, %v1276
        %v1292 = vadd.f32 %v1291, %v1277
        %v1293 = vrot.slane %v1292, 4
        %v1294 = vadd.f32 %v1292, %v1293
        %v1295 = vrot.slane %v1294, 2
        %v1296 = vadd.f32 %v1294, %v1295
        %v1297 = vrot.slane %v1296, 1
        %v1298 = vadd.f32 %v1296, %v1297
        %v1299 = vmul.f32 %v1298, 0.0625
        %1300 = vst [vmem:[%s527] sm:$0xff] %v1135
        %1301 = vst [vmem:[%s527 + $0x8] sm:$0xff] %v1138
        %1302 = vst [vmem:[%s527 + $0x10] sm:$0xff] %v1143
        %1303 = vst [vmem:[%s527 + $0x18] sm:$0xff] %v1146
        %1304 = vst [vmem:[%s527 + $0x20] sm:$0xff] %v1151
        %1305 = vst [vmem:[%s527 + $0x28] sm:$0xff] %v1154
        %1306 = vst [vmem:[%s527 + $0x30] sm:$0xff] %v1159
        %1307 = vst [vmem:[%s527 + $0x38] sm:$0xff] %v1162
        %1308 = vst [vmem:[%s527 + $0x40] sm:$0xff] %v1167
        %1309 = vst [vmem:[%s527 + $0x48] sm:$0xff] %v1170
        %1310 = vst [vmem:[%s527 + $0x50] sm:$0xff] %v1175
        %1311 = vst [vmem:[%s527 + $0x58] sm:$0xff] %v1178
        %1312 = vst [vmem:[%s527 + $0x60] sm:$0xff] %v1183
        %1313 = vst [vmem:[%s527 + $0x68] sm:$0xff] %v1186
        %1314 = vst [vmem:[%s527 + $0x70] sm:$0xff] %v1191
        %1315 = vst [vmem:[%s527 + $0x78] sm:$0xff] %v1194
        %1316 = vst [vmem:[%s496] sm:$0x1] %v1299
        %v1317 = vld [vmem:[%s9] sm:$0xff]
        %v1318 = vld [vmem:[%s9 + $0x8] sm:$0xff]
        %v1319 = vld [vmem:[%s9 + $0x10] sm:$0xff]
        %v1320 = vld [vmem:[%s9 + $0x18] sm:$0xff]
        %v1321 = vld [vmem:[%s9 + $0x20] sm:$0xff]
        %v1322 = vld [vmem:[%s9 + $0x28] sm:$0xff]
        %v1323 = vld [vmem:[%s9 + $0x30] sm:$0xff]
        %v1324 = vld [vmem:[%s9 + $0x38] sm:$0xff]
        %v1325 = vld [vmem:[%s9 + $0x40] sm:$0xff]
        %v1326 = vld [vmem:[%s9 + $0x48] sm:$0xff]
        %v1327 = vld [vmem:[%s9 + $0x50] sm:$0xff]
        %v1328 = vld [vmem:[%s9 + $0x58] sm:$0xff]
        %v1329 = vld [vmem:[%s9 + $0x60] sm:$0xff]
        %v1330 = vld [vmem:[%s9 + $0x68] sm:$0xff]
        %v1331 = vld [vmem:[%s9 + $0x70] sm:$0xff]
        %v1332 = vld [vmem:[%s9 + $0x78] sm:$0xff]
        %v1333 = vld [vmem:[%s9 + $0x80] sm:$0xff]
        %v1334 = vld [vmem:[%s9 + $0x88] sm:$0xff]
        %v1335 = vld [vmem:[%s9 + $0x90] sm:$0xff]
        %v1336 = vld [vmem:[%s9 + $0x98] sm:$0xff]
        %v1337 = vld [vmem:[%s9 + $0xa0] sm:$0xff]
        %v1338 = vld [vmem:[%s9 + $0xa8] sm:$0xff]
        %v1339 = vld [vmem:[%s9 + $0xb0] sm:$0xff]
        %v1340 = vld [vmem:[%s9 + $0xb8] sm:$0xff]
        %v1341 = vld [vmem:[%s9 + $0xc0] sm:$0xff]
        %v1342 = vld [vmem:[%s9 + $0xc8] sm:$0xff]
        %v1343 = vld [vmem:[%s9 + $0xd0] sm:$0xff]
        %v1344 = vld [vmem:[%s9 + $0xd8] sm:$0xff]
        %v1345 = vld [vmem:[%s9 + $0xe0] sm:$0xff]
        %v1346 = vld [vmem:[%s9 + $0xe8] sm:$0xff]
        %v1347 = vld [vmem:[%s9 + $0xf0] sm:$0xff]
        %v1348 = vld [vmem:[%s9 + $0xf8] sm:$0xff]
        %1349 = vmatprep.subr.mxu0 %v1348
        %1350 = vmatpush1.msra.mxu0 %v1347
        %1351 = vmatprep.subr.mxu0 %v1346
        %1352 = vmatpush1.msra.mxu0 %v1345
        %1353 = vmatprep.subr.mxu0 %v1344
        %1354 = vmatpush1.msra.mxu0 %v1343
        %1355 = vmatprep.subr.mxu0 %v1342
        %1356 = vmatpush1.msra.mxu0 %v1341
        %1357 = vmatprep.subr.mxu0 %v1340
        %1358 = vmatpush1.msra.mxu0 %v1339
        %1359 = vmatprep.subr.mxu0 %v1338
        %1360 = vmatpush1.msra.mxu0 %v1337
        %1361 = vmatprep.subr.mxu0 %v1336
        %1362 = vmatpush1.msra.mxu0 %v1335
        %1363 = vmatprep.subr.mxu0 %v1334
        %1364 = vmatpush1.msra.mxu0 %v1333
        %1365 = vmatprep.subr.mxu0 %v1332
        %1366 = vmatpush1.msra.mxu0 %v1331
        %1367 = vmatprep.subr.mxu0 %v1330
        %1368 = vmatpush1.msra.mxu0 %v1329
        %1369 = vmatprep.subr.mxu0 %v1328
        %1370 = vmatpush1.msra.mxu0 %v1327
        %1371 = vmatprep.subr.mxu0 %v1326
        %1372 = vmatpush1.msra.mxu0 %v1325
        %1373 = vmatprep.subr.mxu0 %v1324
        %1374 = vmatpush1.msra.mxu0 %v1323
        %1375 = vmatprep.subr.mxu0 %v1322
        %1376 = vmatpush1.msra.mxu0 %v1321
        %1377 = vmatprep.subr.mxu0 %v1320
        %1378 = vmatpush1.msra.mxu0 %v1319
        %1379 = vmatprep.subr.mxu0 %v1318
        %1380 = vmatpush1.msra.mxu0 %v1317
        %1381 = vmatprep.subr.mxu0 0.0
        %1382 = vmatpush2.msra.mxu0 0.0
        %1383 = vmatprep.subr.mxu0 0.0
        %1384 = vmatpush2.msra.mxu0 0.0
        %1385 = vmatprep.subr.mxu0 0.0
        %1386 = vmatpush2.msra.mxu0 0.0
        %1387 = vmatprep.subr.mxu0 0.0
        %1388 = vmatpush2.msra.mxu0 0.0
        %1389 = vmatprep.subr.mxu0 0.0
        %1390 = vmatpush2.msra.mxu0 0.0
        %1391 = vmatprep.subr.mxu0 0.0
        %1392 = vmatpush2.msra.mxu0 0.0
        %1393 = vmatprep.subr.mxu0 0.0
        %1394 = vmatpush2.msra.mxu0 0.0
        %1395 = vmatprep.subr.mxu0 0.0
        %1396 = vmatpush2.msra.mxu0 0.0
        %1397 = vmatprep.subr.mxu0 0.0
        %1398 = vmatpush2.msra.mxu0 0.0
        %1399 = vmatprep.subr.mxu0 0.0
        %1400 = vmatpush2.msra.mxu0 0.0
        %1401 = vmatprep.subr.mxu0 0.0
        %1402 = vmatpush2.msra.mxu0 0.0
        %1403 = vmatprep.subr.mxu0 0.0
        %1404 = vmatpush2.msra.mxu0 0.0
        %1405 = vmatprep.subr.mxu0 0.0
        %1406 = vmatpush2.msra.mxu0 0.0
        %1407 = vmatprep.subr.mxu0 0.0
        %1408 = vmatpush2.msra.mxu0 0.0
        %1409 = vmatprep.subr.mxu0 0.0
        %1410 = vmatpush2.msra.mxu0 0.0
        %1411 = vmatprep.subr.mxu0 0.0
        %1412 = vmatpush2.msra.mxu0 0.0
        %1413 = vmatprep.mubr.f32.mxu0 0.0
        %1414 = vmatmul.mubr.f32.gmra.mxu0 %v1135
        %v1415 = vpop.f32.mrf.mxu0
        %v1416 = vadd.f32 0.0, %v1415
        %v1417 = vpop.f32.mrf.mxu0
        %v1418 = vadd.f32 0.0, %v1417
        %1419 = vmatprep.mubr.f32.mxu0 0.0
        %1420 = vmatmul.mubr.f32.gmra.mxu0 %v1138
        %v1421 = vpop.f32.mrf.mxu0
        %v1422 = vadd.f32 0.0, %v1421
        %v1423 = vpop.f32.mrf.mxu0
        %v1424 = vadd.f32 0.0, %v1423
        %1425 = vmatprep.mubr.f32.mxu0 0.0
        %1426 = vmatmul.mubr.f32.gmra.mxu0 %v1143
        %v1427 = vpop.f32.mrf.mxu0
        %v1428 = vadd.f32 0.0, %v1427
        %v1429 = vpop.f32.mrf.mxu0
        %v1430 = vadd.f32 0.0, %v1429
        %1431 = vmatprep.mubr.f32.mxu0 0.0
        %1432 = vmatmul.mubr.f32.gmra.mxu0 %v1146
        %v1433 = vpop.f32.mrf.mxu0
        %v1434 = vadd.f32 0.0, %v1433
        %v1435 = vpop.f32.mrf.mxu0
        %v1436 = vadd.f32 0.0, %v1435
        %1437 = vmatprep.mubr.f32.mxu0 0.0
        %1438 = vmatmul.mubr.f32.gmra.mxu0 %v1151
        %v1439 = vpop.f32.mrf.mxu0
        %v1440 = vadd.f32 0.0, %v1439
        %v1441 = vpop.f32.mrf.mxu0
        %v1442 = vadd.f32 0.0, %v1441
        %1443 = vmatprep.mubr.f32.mxu0 0.0
        %1444 = vmatmul.mubr.f32.gmra.mxu0 %v1154
        %v1445 = vpop.f32.mrf.mxu0
        %v1446 = vadd.f32 0.0, %v1445
        %v1447 = vpop.f32.mrf.mxu0
        %v1448 = vadd.f32 0.0, %v1447
        %1449 = vmatprep.mubr.f32.mxu0 0.0
        %1450 = vmatmul.mubr.f32.gmra.mxu0 %v1159
        %v1451 = vpop.f32.mrf.mxu0
        %v1452 = vadd.f32 0.0, %v1451
        %v1453 = vpop.f32.mrf.mxu0
        %v1454 = vadd.f32 0.0, %v1453
        %1455 = vmatprep.mubr.f32.mxu0 0.0
        %1456 = vmatmul.mubr.f32.gmra.mxu0 %v1162
        %v1457 = vpop.f32.mrf.mxu0
        %v1458 = vadd.f32 0.0, %v1457
        %v1459 = vpop.f32.mrf.mxu0
        %v1460 = vadd.f32 0.0, %v1459
        %1461 = vmatprep.mubr.f32.mxu0 0.0
        %1462 = vmatmul.mubr.f32.gmra.mxu0 %v1167
        %v1463 = vpop.f32.mrf.mxu0
        %v1464 = vadd.f32 0.0, %v1463
        %v1465 = vpop.f32.mrf.mxu0
        %v1466 = vadd.f32 0.0, %v1465
        %1467 = vmatprep.mubr.f32.mxu0 0.0
        %1468 = vmatmul.mubr.f32.gmra.mxu0 %v1170
        %v1469 = vpop.f32.mrf.mxu0
        %v1470 = vadd.f32 0.0, %v1469
        %v1471 = vpop.f32.mrf.mxu0
        %v1472 = vadd.f32 0.0, %v1471
        %1473 = vmatprep.mubr.f32.mxu0 0.0
        %1474 = vmatmul.mubr.f32.gmra.mxu0 %v1175
        %v1475 = vpop.f32.mrf.mxu0
        %v1476 = vadd.f32 0.0, %v1475
        %v1477 = vpop.f32.mrf.mxu0
        %v1478 = vadd.f32 0.0, %v1477
        %1479 = vmatprep.mubr.f32.mxu0 0.0
        %1480 = vmatmul.mubr.f32.gmra.mxu0 %v1178
        %v1481 = vpop.f32.mrf.mxu0
        %v1482 = vadd.f32 0.0, %v1481
        %v1483 = vpop.f32.mrf.mxu0
        %v1484 = vadd.f32 0.0, %v1483
        %1485 = vmatprep.mubr.f32.mxu0 0.0
        %1486 = vmatmul.mubr.f32.gmra.mxu0 %v1183
        %v1487 = vpop.f32.mrf.mxu0
        %v1488 = vadd.f32 0.0, %v1487
        %v1489 = vpop.f32.mrf.mxu0
        %v1490 = vadd.f32 0.0, %v1489
        %1491 = vmatprep.mubr.f32.mxu0 0.0
        %1492 = vmatmul.mubr.f32.gmra.mxu0 %v1186
        %v1493 = vpop.f32.mrf.mxu0
        %v1494 = vadd.f32 0.0, %v1493
        %v1495 = vpop.f32.mrf.mxu0
        %v1496 = vadd.f32 0.0, %v1495
        %1497 = vmatprep.mubr.f32.mxu0 0.0
        %1498 = vmatmul.mubr.f32.gmra.mxu0 %v1191
        %v1499 = vpop.f32.mrf.mxu0
        %v1500 = vadd.f32 0.0, %v1499
        %v1501 = vpop.f32.mrf.mxu0
        %v1502 = vadd.f32 0.0, %v1501
        %1503 = vmatprep.mubr.f32.mxu0 0.0
        %1504 = vmatmul.mubr.f32.gmra.mxu0 %v1194
        %v1505 = vpop.f32.mrf.mxu0
        %v1506 = vadd.f32 0.0, %v1505
        %v1507 = vpop.f32.mrf.mxu0
        %v1508 = vadd.f32 0.0, %v1507
        %1509 = vdwg.mxu0
        %v1510 = vld [vmem:[%s10] sm:$0x1]
        %v1512 = vlaneseq
        %v1513 = vshrl.u32 %v1512, 7
        %v1514 = vsub.s32 0, %v1513
        %v1515 = vrot.slane %v1510, %v1514
        %v1517 = vadd.f32 %v1416, %v1515
        %v1518 = vadd.f32 %v1422, %v1515
        %v1519 = vadd.f32 %v1428, %v1515
        %v1520 = vadd.f32 %v1434, %v1515
        %v1521 = vadd.f32 %v1440, %v1515
        %v1522 = vadd.f32 %v1446, %v1515
        %v1523 = vadd.f32 %v1452, %v1515
        %v1524 = vadd.f32 %v1458, %v1515
        %v1525 = vadd.f32 %v1464, %v1515
        %v1526 = vadd.f32 %v1470, %v1515
        %v1527 = vadd.f32 %v1476, %v1515
        %v1528 = vadd.f32 %v1482, %v1515
        %v1529 = vadd.f32 %v1488, %v1515
        %v1530 = vadd.f32 %v1494, %v1515
        %v1531 = vadd.f32 %v1500, %v1515
        %v1532 = vadd.f32 %v1506, %v1515
        %v1533 = vld [vmem:[%s7] sm:$0xff]
        %v1534 = vld [vmem:[%s7 + $0x8] sm:$0xff]
        %v1535 = vld [vmem:[%s7 + $0x10] sm:$0xff]
        %v1536 = vld [vmem:[%s7 + $0x18] sm:$0xff]
        %v1537 = vld [vmem:[%s7 + $0x20] sm:$0xff]
        %v1538 = vld [vmem:[%s7 + $0x28] sm:$0xff]
        %v1539 = vld [vmem:[%s7 + $0x30] sm:$0xff]
        %v1540 = vld [vmem:[%s7 + $0x38] sm:$0xff]
        %v1541 = vld [vmem:[%s7 + $0x40] sm:$0xff]
        %v1542 = vld [vmem:[%s7 + $0x48] sm:$0xff]
        %v1543 = vld [vmem:[%s7 + $0x50] sm:$0xff]
        %v1544 = vld [vmem:[%s7 + $0x58] sm:$0xff]
        %v1545 = vld [vmem:[%s7 + $0x60] sm:$0xff]
        %v1546 = vld [vmem:[%s7 + $0x68] sm:$0xff]
        %v1547 = vld [vmem:[%s7 + $0x70] sm:$0xff]
        %v1548 = vld [vmem:[%s7 + $0x78] sm:$0xff]
        %v1549 = vld [vmem:[%s8] sm:$0x1]
        %1550 = vmatprep.subr.mxu0 0.0
        %1551 = vmatpush1.msra.mxu0 %v1548
        %1552 = vmatprep.subr.mxu0 0.0
        %1553 = vmatpush1.msra.mxu0 %v1547
        %1554 = vmatprep.subr.mxu0 0.0
        %1555 = vmatpush1.msra.mxu0 %v1546
        %1556 = vmatprep.subr.mxu0 0.0
        %1557 = vmatpush1.msra.mxu0 %v1545
        %1558 = vmatprep.subr.mxu0 0.0
        %1559 = vmatpush1.msra.mxu0 %v1544
        %1560 = vmatprep.subr.mxu0 0.0
        %1561 = vmatpush1.msra.mxu0 %v1543
        %1562 = vmatprep.subr.mxu0 0.0
        %1563 = vmatpush1.msra.mxu0 %v1542
        %1564 = vmatprep.subr.mxu0 0.0
        %1565 = vmatpush1.msra.mxu0 %v1541
        %1566 = vmatprep.subr.mxu0 0.0
        %1567 = vmatpush1.msra.mxu0 %v1540
        %1568 = vmatprep.subr.mxu0 0.0
        %1569 = vmatpush1.msra.mxu0 %v1539
        %1570 = vmatprep.subr.mxu0 0.0
        %1571 = vmatpush1.msra.mxu0 %v1538
        %1572 = vmatprep.subr.mxu0 0.0
        %1573 = vmatpush1.msra.mxu0 %v1537
        %1574 = vmatprep.subr.mxu0 0.0
        %1575 = vmatpush1.msra.mxu0 %v1536
        %1576 = vmatprep.subr.mxu0 0.0
        %1577 = vmatpush1.msra.mxu0 %v1535
        %1578 = vmatprep.subr.mxu0 0.0
        %1579 = vmatpush1.msra.mxu0 %v1534
        %1580 = vmatprep.subr.mxu0 0.0
        %1581 = vmatpush1.msra.mxu0 %v1533
        %1582 = vmatprep.subr.mxu0 0.0
        %1583 = vmatpush2.msra.mxu0 0.0
        %1584 = vmatprep.subr.mxu0 0.0
        %1585 = vmatpush2.msra.mxu0 0.0
        %1586 = vmatprep.subr.mxu0 0.0
        %1587 = vmatpush2.msra.mxu0 0.0
        %1588 = vmatprep.subr.mxu0 0.0
        %1589 = vmatpush2.msra.mxu0 0.0
        %1590 = vmatprep.subr.mxu0 0.0
        %1591 = vmatpush2.msra.mxu0 0.0
        %1592 = vmatprep.subr.mxu0 0.0
        %1593 = vmatpush2.msra.mxu0 0.0
        %1594 = vmatprep.subr.mxu0 0.0
        %1595 = vmatpush2.msra.mxu0 0.0
        %1596 = vmatprep.subr.mxu0 0.0
        %1597 = vmatpush2.msra.mxu0 0.0
        %1598 = vmatprep.subr.mxu0 0.0
        %1599 = vmatpush2.msra.mxu0 0.0
        %1600 = vmatprep.subr.mxu0 0.0
        %1601 = vmatpush2.msra.mxu0 0.0
        %1602 = vmatprep.subr.mxu0 0.0
        %1603 = vmatpush2.msra.mxu0 0.0
        %1604 = vmatprep.subr.mxu0 0.0
        %1605 = vmatpush2.msra.mxu0 0.0
        %1606 = vmatprep.subr.mxu0 0.0
        %1607 = vmatpush2.msra.mxu0 0.0
        %1608 = vmatprep.subr.mxu0 0.0
        %1609 = vmatpush2.msra.mxu0 0.0
        %1610 = vmatprep.subr.mxu0 0.0
        %1611 = vmatpush2.msra.mxu0 0.0
        %1612 = vmatprep.subr.mxu0 0.0
        %1613 = vmatpush2.msra.mxu0 0.0
        %1614 = vmatprep.mubr.f32.mxu0 0.0
        %1615 = vmatmul.mubr.f32.gmra.mxu0 %v1299
        %v1616 = vpop.f32.mrf.mxu0
        %v1617 = vadd.f32 %v1549, %v1616
        %v1618 = vpop.f32.mrf.mxu0
        %1619 = vdwg.mxu0
        %v1620 = vlaneseq
        %v1621 = vand.u32 %v1620, 127
        %v1622 = vld [vmem:[%s522] sm:$0x1]
        %vm1623 = vcmp.ge.s32.totalorder %v1621, 16
        %v1624 = vsel %vm1623, -1e+09, 0.0
        %v1625 = vmul.f32 %v1622, -1e+09
        %v1626 = vadd.f32 %v1625, %v1624
        %1627 = vst [vmem:[#allocation2] sm:$0x1] %v1626
        %v1628 = vlaneseq
        %v1629 = vshrl.u32 %v1628, 7
        %v1630 = vsub.s32 0, %v1629
        %v1631 = vrot.slane %v1622, %v1630
        %1633 = vbcast.lane.b32.xlu0 %v1631, 256
        %v1634 = vpop.permute.xlu0 %1633
        %s1636 = sor.u32 256, 8
        %1637 = vbcast.lane.b32.xlu0 %v1631, %s1636
        %v1638 = vpop.permute.xlu0 %1637
        %s1640 = sor.u32 256, 16
        %1641 = vbcast.lane.b32.xlu0 %v1631, %s1640
        %v1642 = vpop.permute.xlu0 %1641
        %s1644 = sor.u32 256, 24
        %1645 = vbcast.lane.b32.xlu0 %v1631, %s1644
        %v1646 = vpop.permute.xlu0 %1645
        %s1648 = sor.u32 256, 32
        %1649 = vbcast.lane.b32.xlu0 %v1631, %s1648
        %v1650 = vpop.permute.xlu0 %1649
        %s1652 = sor.u32 256, 40
        %1653 = vbcast.lane.b32.xlu0 %v1631, %s1652
        %v1654 = vpop.permute.xlu0 %1653
        %s1656 = sor.u32 256, 48
        %1657 = vbcast.lane.b32.xlu0 %v1631, %s1656
        %v1658 = vpop.permute.xlu0 %1657
        %s1660 = sor.u32 256, 56
        %1661 = vbcast.lane.b32.xlu0 %v1631, %s1660
        %v1662 = vpop.permute.xlu0 %1661
        %s1664 = sor.u32 256, 64
        %1665 = vbcast.lane.b32.xlu0 %v1631, %s1664
        %v1666 = vpop.permute.xlu0 %1665
        %s1668 = sor.u32 256, 72
        %1669 = vbcast.lane.b32.xlu0 %v1631, %s1668
        %v1670 = vpop.permute.xlu0 %1669
        %s1672 = sor.u32 256, 80
        %1673 = vbcast.lane.b32.xlu0 %v1631, %s1672
        %v1674 = vpop.permute.xlu0 %1673
        %s1676 = sor.u32 256, 88
        %1677 = vbcast.lane.b32.xlu0 %v1631, %s1676
        %v1678 = vpop.permute.xlu0 %1677
        %s1680 = sor.u32 256, 96
        %1681 = vbcast.lane.b32.xlu0 %v1631, %s1680
        %v1682 = vpop.permute.xlu0 %1681
        %s1684 = sor.u32 256, 104
        %1685 = vbcast.lane.b32.xlu0 %v1631, %s1684
        %v1686 = vpop.permute.xlu0 %1685
        %s1688 = sor.u32 256, 112
        %1689 = vbcast.lane.b32.xlu0 %v1631, %s1688
        %v1690 = vpop.permute.xlu0 %1689
        %s1692 = sor.u32 256, 120
        %1693 = vbcast.lane.b32.xlu0 %v1631, %s1692
        %v1694 = vpop.permute.xlu0 %1693
        %v1695 = vmul.f32 %v1634, %v1418
        %v1696 = vmul.f32 %v1638, %v1424
        %v1697 = vmul.f32 %v1642, %v1430
        %v1698 = vmul.f32 %v1646, %v1436
        %v1699 = vmul.f32 %v1650, %v1442
        %v1700 = vmul.f32 %v1654, %v1448
        %v1701 = vmul.f32 %v1658, %v1454
        %v1702 = vmul.f32 %v1662, %v1460
        %v1703 = vmul.f32 %v1666, %v1466
        %v1704 = vmul.f32 %v1670, %v1472
        %v1705 = vmul.f32 %v1674, %v1478
        %v1706 = vmul.f32 %v1678, %v1484
        %v1707 = vmul.f32 %v1682, %v1490
        %v1708 = vmul.f32 %v1686, %v1496
        %v1709 = vmul.f32 %v1690, %v1502
        %v1710 = vmul.f32 %v1694, %v1508
        %v1711 = vadd.f32 %v1695, %v1696
        %v1712 = vadd.f32 %v1711, %v1697
        %v1713 = vadd.f32 %v1712, %v1698
        %v1714 = vadd.f32 %v1713, %v1699
        %v1715 = vadd.f32 %v1714, %v1700
        %v1716 = vadd.f32 %v1715, %v1701
        %v1717 = vadd.f32 %v1716, %v1702
        %v1718 = vadd.f32 %v1717, %v1703
        %v1719 = vadd.f32 %v1718, %v1704
        %v1720 = vadd.f32 %v1719, %v1705
        %v1721 = vadd.f32 %v1720, %v1706
        %v1722 = vadd.f32 %v1721, %v1707
        %v1723 = vadd.f32 %v1722, %v1708
        %v1724 = vadd.f32 %v1723, %v1709
        %v1725 = vadd.f32 %v1724, %v1710
        %v1726 = vrot.slane %v1725, 4
        %v1727 = vadd.f32 %v1725, %v1726
        %v1728 = vrot.slane %v1727, 2
        %v1729 = vadd.f32 %v1727, %v1728
        %v1730 = vrot.slane %v1729, 1
        %v1731 = vadd.f32 %v1729, %v1730
        %1732 = vst [vmem:[#allocation3] sm:$0x1] %v1731
        %1733 = vst [vmem:[#allocation3 + $0x1] sm:$0x1] %v1731
        %1734 = vst [vmem:[#allocation3 + $0x2] sm:$0x1] %v1731
        loop: start=0, step=1, limit=8
        $region65: #{rl_routing_forward.1} parent=63 // loop_pre_header
          _
        $region66: #{rl_routing_forward.1} parent=63 // loop_header
          %s1736 = sphi 0, %s1740
          %p1737 = scmp.ge.s32.totalorder %s1736, 8
        $region67: #{rl_routing_forward.1} parent=63 // loop_header_branch
          %1739 = sbr.rel (%p1737) target = $region71
        $region68: #{rl_routing_forward.1} parent=63 // loop_body
          %p1741 = scmp.lt.s32.totalorder %s1736, 0
          %s1742 = ssub.s32 0, %s1736
          %s1743 = scalar_select %p1741, %s1742, %s1736
          %s1744 = sdiv.u32.pop %s1743, 3
          %s1745 = srem.u32.pop %s1743, 3
          %s1746 = ssub.s32 0, %s1745
          %s1747 = scalar_select %p1741, %s1746, %s1745
          %p1748 = scmp.ne.s32.totalorder %s1747, 0
          %p1749 = scmp.lt.s32.totalorder %s1747, 0
          %p1750 = pnand %p1749, %p1748
          %p1751 = pneg %p1750
          %s1752 = sadd.s32 %s1747, 3
          %s1753 = scalar_select %p1751, %s1752, %s1747
          %s1754 = scalar_lea.vmem [#allocation3], %s1753
          %v1755 = vld [vmem:[%s1754] sm:$0x1]
          %v1756 = vadd.f32 %v1617, %v1755
          %v1757 = vtanh.pop %v1756
          %v1758 = vlaneseq
          %v1759 = vshrl.u32 %v1758, 7
          %v1760 = vsub.s32 0, %v1759
          %v1761 = vrot.slane %v1757, %v1760
          %v1762 = vmul.f32 %v1761, %v1517
          %v1763 = vmul.f32 %v1761, %v1518
          %v1764 = vmul.f32 %v1761, %v1519
          %v1765 = vmul.f32 %v1761, %v1520
          %v1766 = vmul.f32 %v1761, %v1521
          %v1767 = vmul.f32 %v1761, %v1522
          %v1768 = vmul.f32 %v1761, %v1523
          %v1769 = vmul.f32 %v1761, %v1524
          %v1770 = vmul.f32 %v1761, %v1525
          %v1771 = vmul.f32 %v1761, %v1526
          %v1772 = vmul.f32 %v1761, %v1527
          %v1773 = vmul.f32 %v1761, %v1528
          %v1774 = vmul.f32 %v1761, %v1529
          %v1775 = vmul.f32 %v1761, %v1530
          %v1776 = vmul.f32 %v1761, %v1531
          %v1777 = vmul.f32 %v1761, %v1532
          %1778 = vadd.xlane.f32.xlu0 %v1762
          %v1779 = vpop.xlane.xlu0 %1778
          %1780 = vadd.xlane.f32.xlu0 %v1763
          %v1781 = vpop.xlane.xlu0 %1780
          %1782 = vadd.xlane.f32.xlu0 %v1764
          %v1783 = vpop.xlane.xlu0 %1782
          %1784 = vadd.xlane.f32.xlu0 %v1765
          %v1785 = vpop.xlane.xlu0 %1784
          %1786 = vadd.xlane.f32.xlu0 %v1766
          %v1787 = vpop.xlane.xlu0 %1786
          %1788 = vadd.xlane.f32.xlu0 %v1767
          %v1789 = vpop.xlane.xlu0 %1788
          %1790 = vadd.xlane.f32.xlu0 %v1768
          %v1791 = vpop.xlane.xlu0 %1790
          %1792 = vadd.xlane.f32.xlu0 %v1769
          %v1793 = vpop.xlane.xlu0 %1792
          %1794 = vadd.xlane.f32.xlu0 %v1770
          %v1795 = vpop.xlane.xlu0 %1794
          %1796 = vadd.xlane.f32.xlu0 %v1771
          %v1797 = vpop.xlane.xlu0 %1796
          %1798 = vadd.xlane.f32.xlu0 %v1772
          %v1799 = vpop.xlane.xlu0 %1798
          %1800 = vadd.xlane.f32.xlu0 %v1773
          %v1801 = vpop.xlane.xlu0 %1800
          %1802 = vadd.xlane.f32.xlu0 %v1774
          %v1803 = vpop.xlane.xlu0 %1802
          %1804 = vadd.xlane.f32.xlu0 %v1775
          %v1805 = vpop.xlane.xlu0 %1804
          %1806 = vadd.xlane.f32.xlu0 %v1776
          %v1807 = vpop.xlane.xlu0 %1806
          %1808 = vadd.xlane.f32.xlu0 %v1777
          %v1809 = vpop.xlane.xlu0 %1808
          %v1810 = vmul.f32 %v1779, 0.17677669
          %v1811 = vmul.f32 %v1781, 0.17677669
          %v1812 = vmul.f32 %v1783, 0.17677669
          %v1813 = vmul.f32 %v1785, 0.17677669
          %v1814 = vmul.f32 %v1787, 0.17677669
          %v1815 = vmul.f32 %v1789, 0.17677669
          %v1816 = vmul.f32 %v1791, 0.17677669
          %v1817 = vmul.f32 %v1793, 0.17677669
          %v1818 = vmul.f32 %v1795, 0.17677669
          %v1819 = vmul.f32 %v1797, 0.17677669
          %v1820 = vmul.f32 %v1799, 0.17677669
          %v1821 = vmul.f32 %v1801, 0.17677669
          %v1822 = vmul.f32 %v1803, 0.17677669
          %v1823 = vmul.f32 %v1805, 0.17677669
          %v1824 = vmul.f32 %v1807, 0.17677669
          %v1825 = vmul.f32 %v1809, 0.17677669
          %v1826 = vld [vmem:[#allocation2] sm:$0x1]
          %v1828 = vlaneseq
          %v1829 = vshrl.u32 %v1828, 7
          %v1830 = vsub.s32 0, %v1829
          %v1831 = vrot.slane %v1826, %v1830
          %1833 = vbcast.lane.b32.xlu0 %v1831, 256
          %v1834 = vpop.permute.xlu0 %1833
          %s1836 = sor.u32 256, 8
          %1837 = vbcast.lane.b32.xlu0 %v1831, %s1836
          %v1838 = vpop.permute.xlu0 %1837
          %s1840 = sor.u32 256, 16
          %1841 = vbcast.lane.b32.xlu0 %v1831, %s1840
          %v1842 = vpop.permute.xlu0 %1841
          %s1844 = sor.u32 256, 24
          %1845 = vbcast.lane.b32.xlu0 %v1831, %s1844
          %v1846 = vpop.permute.xlu0 %1845
          %s1848 = sor.u32 256, 32
          %1849 = vbcast.lane.b32.xlu0 %v1831, %s1848
          %v1850 = vpop.permute.xlu0 %1849
          %s1852 = sor.u32 256, 40
          %1853 = vbcast.lane.b32.xlu0 %v1831, %s1852
          %v1854 = vpop.permute.xlu0 %1853
          %s1856 = sor.u32 256, 48
          %1857 = vbcast.lane.b32.xlu0 %v1831, %s1856
          %v1858 = vpop.permute.xlu0 %1857
          %s1860 = sor.u32 256, 56
          %1861 = vbcast.lane.b32.xlu0 %v1831, %s1860
          %v1862 = vpop.permute.xlu0 %1861
          %s1864 = sor.u32 256, 64
          %1865 = vbcast.lane.b32.xlu0 %v1831, %s1864
          %v1866 = vpop.permute.xlu0 %1865
          %s1868 = sor.u32 256, 72
          %1869 = vbcast.lane.b32.xlu0 %v1831, %s1868
          %v1870 = vpop.permute.xlu0 %1869
          %s1872 = sor.u32 256, 80
          %1873 = vbcast.lane.b32.xlu0 %v1831, %s1872
          %v1874 = vpop.permute.xlu0 %1873
          %s1876 = sor.u32 256, 88
          %1877 = vbcast.lane.b32.xlu0 %v1831, %s1876
          %v1878 = vpop.permute.xlu0 %1877
          %s1880 = sor.u32 256, 96
          %1881 = vbcast.lane.b32.xlu0 %v1831, %s1880
          %v1882 = vpop.permute.xlu0 %1881
          %s1884 = sor.u32 256, 104
          %1885 = vbcast.lane.b32.xlu0 %v1831, %s1884
          %v1886 = vpop.permute.xlu0 %1885
          %s1888 = sor.u32 256, 112
          %1889 = vbcast.lane.b32.xlu0 %v1831, %s1888
          %v1890 = vpop.permute.xlu0 %1889
          %s1892 = sor.u32 256, 120
          %1893 = vbcast.lane.b32.xlu0 %v1831, %s1892
          %v1894 = vpop.permute.xlu0 %1893
          %v1911 = vadd.f32 %v1810, %v1834
          %v1912 = vadd.f32 %v1811, %v1838
          %v1913 = vadd.f32 %v1812, %v1842
          %v1914 = vadd.f32 %v1813, %v1846
          %v1915 = vadd.f32 %v1814, %v1850
          %v1916 = vadd.f32 %v1815, %v1854
          %v1917 = vadd.f32 %v1816, %v1858
          %v1918 = vadd.f32 %v1817, %v1862
          %v1919 = vadd.f32 %v1818, %v1866
          %v1920 = vadd.f32 %v1819, %v1870
          %v1921 = vadd.f32 %v1820, %v1874
          %v1922 = vadd.f32 %v1821, %v1878
          %v1923 = vadd.f32 %v1822, %v1882
          %v1924 = vadd.f32 %v1823, %v1886
          %v1925 = vadd.f32 %v1824, %v1890
          %v1926 = vadd.f32 %v1825, %v1894
          %vm1927 = vcmask 7168
          %v1928 = vsel %vm1927, %v1911, -inf
          %v1929 = vsel %vm1927, %v1912, -inf
          %v1930 = vsel %vm1927, %v1913, -inf
          %v1931 = vsel %vm1927, %v1914, -inf
          %v1932 = vsel %vm1927, %v1915, -inf
          %v1933 = vmax.f32 %v1928, %v1932
          %v1934 = vsel %vm1927, %v1916, -inf
          %v1935 = vmax.f32 %v1929, %v1934
          %v1936 = vsel %vm1927, %v1917, -inf
          %v1937 = vmax.f32 %v1930, %v1936
          %v1938 = vsel %vm1927, %v1918, -inf
          %v1939 = vmax.f32 %v1931, %v1938
          %v1940 = vsel %vm1927, %v1919, -inf
          %v1941 = vmax.f32 %v1933, %v1940
          %v1942 = vsel %vm1927, %v1920, -inf
          %v1943 = vmax.f32 %v1935, %v1942
          %v1944 = vsel %vm1927, %v1921, -inf
          %v1945 = vmax.f32 %v1937, %v1944
          %v1946 = vsel %vm1927, %v1922, -inf
          %v1947 = vmax.f32 %v1939, %v1946
          %v1948 = vsel %vm1927, %v1923, -inf
          %v1949 = vmax.f32 %v1941, %v1948
          %v1950 = vsel %vm1927, %v1924, -inf
          %v1951 = vmax.f32 %v1943, %v1950
          %v1952 = vsel %vm1927, %v1925, -inf
          %v1953 = vmax.f32 %v1945, %v1952
          %v1954 = vsel %vm1927, %v1926, -inf
          %v1955 = vmax.f32 %v1947, %v1954
          %v1956 = vmax.f32 %v1949, %v1951
          %v1957 = vmax.f32 %v1953, %v1955
          %v1958 = vmax.f32 %v1956, %v1957
          %v1959 = vrot.slane %v1958, 4
          %v1960 = vmax.f32 %v1958, %v1959
          %v1961 = vrot.slane %v1960, 2
          %v1962 = vmax.f32 %v1960, %v1961
          %v1963 = vrot.slane %v1962, 1
          %v1964 = vmax.f32 %v1962, %v1963
          %1966 = vset.pattern.permute.xlu0 0
          %1967 = vperm.xlu0 %1966, %v1964
          %v1968 = vpop.permute.xlu0 %1967
          %vm1970 = vcmp.ge.f32.partialorder %v1911, %v1968
          %vm1971 = vcmp.ge.f32.partialorder %v1912, %v1968
          %vm1972 = vcmp.ge.f32.partialorder %v1913, %v1968
          %vm1973 = vcmp.ge.f32.partialorder %v1914, %v1968
          %vm1974 = vcmp.ge.f32.partialorder %v1915, %v1968
          %vm1975 = vcmp.ge.f32.partialorder %v1916, %v1968
          %vm1976 = vcmp.ge.f32.partialorder %v1917, %v1968
          %vm1977 = vcmp.ge.f32.partialorder %v1918, %v1968
          %vm1978 = vcmp.ge.f32.partialorder %v1919, %v1968
          %vm1979 = vcmp.ge.f32.partialorder %v1920, %v1968
          %vm1980 = vcmp.ge.f32.partialorder %v1921, %v1968
          %vm1981 = vcmp.ge.f32.partialorder %v1922, %v1968
          %vm1982 = vcmp.ge.f32.partialorder %v1923, %v1968
          %vm1983 = vcmp.ge.f32.partialorder %v1924, %v1968
          %vm1984 = vcmp.ge.f32.partialorder %v1925, %v1968
          %vm1985 = vcmp.ge.f32.partialorder %v1926, %v1968
          %1987 = vbcast.lane.b32.xlu0 %v1621, 256
          %v1988 = vpop.permute.xlu0 %1987
          %s1990 = sor.u32 256, 8
          %1991 = vbcast.lane.b32.xlu0 %v1621, %s1990
          %v1992 = vpop.permute.xlu0 %1991
          %s1994 = sor.u32 256, 16
          %1995 = vbcast.lane.b32.xlu0 %v1621, %s1994
          %v1996 = vpop.permute.xlu0 %1995
          %s1998 = sor.u32 256, 24
          %1999 = vbcast.lane.b32.xlu0 %v1621, %s1998
          %v2000 = vpop.permute.xlu0 %1999
          %s2002 = sor.u32 256, 32
          %2003 = vbcast.lane.b32.xlu0 %v1621, %s2002
          %v2004 = vpop.permute.xlu0 %2003
          %s2006 = sor.u32 256, 40
          %2007 = vbcast.lane.b32.xlu0 %v1621, %s2006
          %v2008 = vpop.permute.xlu0 %2007
          %s2010 = sor.u32 256, 48
          %2011 = vbcast.lane.b32.xlu0 %v1621, %s2010
          %v2012 = vpop.permute.xlu0 %2011
          %s2014 = sor.u32 256, 56
          %2015 = vbcast.lane.b32.xlu0 %v1621, %s2014
          %v2016 = vpop.permute.xlu0 %2015
          %s2018 = sor.u32 256, 64
          %2019 = vbcast.lane.b32.xlu0 %v1621, %s2018
          %v2020 = vpop.permute.xlu0 %2019
          %s2022 = sor.u32 256, 72
          %2023 = vbcast.lane.b32.xlu0 %v1621, %s2022
          %v2024 = vpop.permute.xlu0 %2023
          %s2026 = sor.u32 256, 80
          %2027 = vbcast.lane.b32.xlu0 %v1621, %s2026
          %v2028 = vpop.permute.xlu0 %2027
          %s2030 = sor.u32 256, 88
          %2031 = vbcast.lane.b32.xlu0 %v1621, %s2030
          %v2032 = vpop.permute.xlu0 %2031
          %s2034 = sor.u32 256, 96
          %2035 = vbcast.lane.b32.xlu0 %v1621, %s2034
          %v2036 = vpop.permute.xlu0 %2035
          %s2038 = sor.u32 256, 104
          %2039 = vbcast.lane.b32.xlu0 %v1621, %s2038
          %v2040 = vpop.permute.xlu0 %2039
          %s2042 = sor.u32 256, 112
          %2043 = vbcast.lane.b32.xlu0 %v1621, %s2042
          %v2044 = vpop.permute.xlu0 %2043
          %s2046 = sor.u32 256, 120
          %2047 = vbcast.lane.b32.xlu0 %v1621, %s2046
          %v2048 = vpop.permute.xlu0 %2047
          %v2049 = vsel %vm1970, %v1988, 128
          %v2050 = vsel %vm1971, %v1992, 128
          %v2051 = vsel %vm1972, %v1996, 128
          %v2052 = vsel %vm1973, %v2000, 128
          %v2053 = vsel %vm1974, %v2004, 128
          %v2054 = vsel %vm1975, %v2008, 128
          %v2055 = vsel %vm1976, %v2012, 128
          %v2056 = vsel %vm1977, %v2016, 128
          %v2057 = vsel %vm1978, %v2020, 128
          %v2058 = vsel %vm1979, %v2024, 128
          %v2059 = vsel %vm1980, %v2028, 128
          %v2060 = vsel %vm1981, %v2032, 128
          %v2061 = vsel %vm1982, %v2036, 128
          %v2062 = vsel %vm1983, %v2040, 128
          %v2063 = vsel %vm1984, %v2044, 128
          %v2064 = vsel %vm1985, %v2048, 128
          %v2065 = vsel %vm1927, %v2049, 2147483647
          %v2066 = vsel %vm1927, %v2050, 2147483647
          %v2067 = vsel %vm1927, %v2051, 2147483647
          %v2068 = vsel %vm1927, %v2052, 2147483647
          %v2069 = vsel %vm1927, %v2053, 2147483647
          %vm2070 = vcmp.lt.s32.totalorder %v2065, %v2069
          %v2071 = vsel %vm2070, %v2065, %v2069
          %v2072 = vsel %vm1927, %v2054, 2147483647
          %vm2073 = vcmp.lt.s32.totalorder %v2066, %v2072
          %v2074 = vsel %vm2073, %v2066, %v2072
          %v2075 = vsel %vm1927, %v2055, 2147483647
          %vm2076 = vcmp.lt.s32.totalorder %v2067, %v2075
          %v2077 = vsel %vm2076, %v2067, %v2075
          %v2078 = vsel %vm1927, %v2056, 2147483647
          %vm2079 = vcmp.lt.s32.totalorder %v2068, %v2078
          %v2080 = vsel %vm2079, %v2068, %v2078
          %v2081 = vsel %vm1927, %v2057, 2147483647
          %vm2082 = vcmp.lt.s32.totalorder %v2071, %v2081
          %v2083 = vsel %vm2082, %v2071, %v2081
          %v2084 = vsel %vm1927, %v2058, 2147483647
          %vm2085 = vcmp.lt.s32.totalorder %v2074, %v2084
          %v2086 = vsel %vm2085, %v2074, %v2084
          %v2087 = vsel %vm1927, %v2059, 2147483647
          %vm2088 = vcmp.lt.s32.totalorder %v2077, %v2087
          %v2089 = vsel %vm2088, %v2077, %v2087
          %v2090 = vsel %vm1927, %v2060, 2147483647
          %vm2091 = vcmp.lt.s32.totalorder %v2080, %v2090
          %v2092 = vsel %vm2091, %v2080, %v2090
          %v2093 = vsel %vm1927, %v2061, 2147483647
          %vm2094 = vcmp.lt.s32.totalorder %v2083, %v2093
          %v2095 = vsel %vm2094, %v2083, %v2093
          %v2096 = vsel %vm1927, %v2062, 2147483647
          %vm2097 = vcmp.lt.s32.totalorder %v2086, %v2096
          %v2098 = vsel %vm2097, %v2086, %v2096
          %v2099 = vsel %vm1927, %v2063, 2147483647
          %vm2100 = vcmp.lt.s32.totalorder %v2089, %v2099
          %v2101 = vsel %vm2100, %v2089, %v2099
          %v2102 = vsel %vm1927, %v2064, 2147483647
          %vm2103 = vcmp.lt.s32.totalorder %v2092, %v2102
          %v2104 = vsel %vm2103, %v2092, %v2102
          %vm2105 = vcmp.lt.s32.totalorder %v2095, %v2098
          %v2106 = vsel %vm2105, %v2095, %v2098
          %vm2107 = vcmp.lt.s32.totalorder %v2101, %v2104
          %v2108 = vsel %vm2107, %v2101, %v2104
          %vm2109 = vcmp.lt.s32.totalorder %v2106, %v2108
          %v2110 = vsel %vm2109, %v2106, %v2108
          %v2111 = vrot.slane %v2110, 4
          %vm2112 = vcmp.lt.s32.totalorder %v2110, %v2111
          %v2113 = vsel %vm2112, %v2110, %v2111
          %v2114 = vrot.slane %v2113, 2
          %vm2115 = vcmp.lt.s32.totalorder %v2113, %v2114
          %v2116 = vsel %vm2115, %v2113, %v2114
          %v2117 = vrot.slane %v2116, 1
          %vm2118 = vcmp.lt.s32.totalorder %v2116, %v2117
          %v2119 = vsel %vm2118, %v2116, %v2117
          %2136 = vset.pattern.permute.xlu0 0
          %2137 = vperm.xlu0 %2136, %v1911
          %v2138 = vpop.permute.xlu0 %2137
          %2139 = vset.pattern.permute.xlu0 0
          %2140 = vperm.xlu0 %2139, %v1912
          %v2141 = vpop.permute.xlu0 %2140
          %2142 = vset.pattern.permute.xlu0 0
          %2143 = vperm.xlu0 %2142, %v1913
          %v2144 = vpop.permute.xlu0 %2143
          %2145 = vset.pattern.permute.xlu0 0
          %2146 = vperm.xlu0 %2145, %v1914
          %v2147 = vpop.permute.xlu0 %2146
          %2148 = vset.pattern.permute.xlu0 0
          %2149 = vperm.xlu0 %2148, %v1915
          %v2150 = vpop.permute.xlu0 %2149
          %2151 = vset.pattern.permute.xlu0 0
          %2152 = vperm.xlu0 %2151, %v1916
          %v2153 = vpop.permute.xlu0 %2152
          %2154 = vset.pattern.permute.xlu0 0
          %2155 = vperm.xlu0 %2154, %v1917
          %v2156 = vpop.permute.xlu0 %2155
          %2157 = vset.pattern.permute.xlu0 0
          %2158 = vperm.xlu0 %2157, %v1918
          %v2159 = vpop.permute.xlu0 %2158
          %2160 = vset.pattern.permute.xlu0 0
          %2161 = vperm.xlu0 %2160, %v1919
          %v2162 = vpop.permute.xlu0 %2161
          %2163 = vset.pattern.permute.xlu0 0
          %2164 = vperm.xlu0 %2163, %v1920
          %v2165 = vpop.permute.xlu0 %2164
          %2166 = vset.pattern.permute.xlu0 0
          %2167 = vperm.xlu0 %2166, %v1921
          %v2168 = vpop.permute.xlu0 %2167
          %2169 = vset.pattern.permute.xlu0 0
          %2170 = vperm.xlu0 %2169, %v1922
          %v2171 = vpop.permute.xlu0 %2170
          %2172 = vset.pattern.permute.xlu0 0
          %2173 = vperm.xlu0 %2172, %v1923
          %v2174 = vpop.permute.xlu0 %2173
          %2175 = vset.pattern.permute.xlu0 0
          %2176 = vperm.xlu0 %2175, %v1924
          %v2177 = vpop.permute.xlu0 %2176
          %2178 = vset.pattern.permute.xlu0 0
          %2179 = vperm.xlu0 %2178, %v1925
          %v2180 = vpop.permute.xlu0 %2179
          %2181 = vset.pattern.permute.xlu0 0
          %2182 = vperm.xlu0 %2181, %v1926
          %v2183 = vpop.permute.xlu0 %2182
          %v2184 = vlaneseq
          %v2185 = vshrl.u32 %v2184, 7
          %v2186 = vsub.s32 %v1621, %v2185
          %v2187 = vrot.slane %v2138, %v2186
          %v2188 = vadd.s32 %v1621, 4294967288
          %v2189 = vlaneseq
          %v2190 = vshrl.u32 %v2189, 7
          %v2191 = vsub.s32 %v2188, %v2190
          %v2192 = vrot.slane %v2141, %v2191
          %vm2193 = vcmask 130112
          %v2194 = vsel %vm2193, %v2192, %v2187
          %v2195 = vadd.s32 %v1621, 4294967280
          %v2196 = vlaneseq
          %v2197 = vshrl.u32 %v2196, 7
          %v2198 = vsub.s32 %v2195, %v2197
          %v2199 = vrot.slane %v2144, %v2198
          %vm2200 = vcmask 195712
          %v2201 = vsel %vm2200, %v2199, %v2194
          %v2202 = vadd.s32 %v1621, 4294967272
          %v2203 = vlaneseq
          %v2204 = vshrl.u32 %v2203, 7
          %v2205 = vsub.s32 %v2202, %v2204
          %v2206 = vrot.slane %v2147, %v2205
          %vm2207 = vcmask 261312
          %v2208 = vsel %vm2207, %v2206, %v2201
          %v2209 = vadd.s32 %v1621, 4294967264
          %v2210 = vlaneseq
          %v2211 = vshrl.u32 %v2210, 7
          %v2212 = vsub.s32 %v2209, %v2211
          %v2213 = vrot.slane %v2150, %v2212
          %vm2214 = vcmask 326912
          %v2215 = vsel %vm2214, %v2213, %v2208
          %v2216 = vadd.s32 %v1621, 4294967256
          %v2217 = vlaneseq
          %v2218 = vshrl.u32 %v2217, 7
          %v2219 = vsub.s32 %v2216, %v2218
          %v2220 = vrot.slane %v2153, %v2219
          %vm2221 = vcmask 392512
          %v2222 = vsel %vm2221, %v2220, %v2215
          %v2223 = vadd.s32 %v1621, 4294967248
          %v2224 = vlaneseq
          %v2225 = vshrl.u32 %v2224, 7
          %v2226 = vsub.s32 %v2223, %v2225
          %v2227 = vrot.slane %v2156, %v2226
          %vm2228 = vcmask 458112
          %v2229 = vsel %vm2228, %v2227, %v2222
          %v2230 = vadd.s32 %v1621, 4294967240
          %v2231 = vlaneseq
          %v2232 = vshrl.u32 %v2231, 7
          %v2233 = vsub.s32 %v2230, %v2232
          %v2234 = vrot.slane %v2159, %v2233
          %vm2235 = vcmask 523712
          %v2236 = vsel %vm2235, %v2234, %v2229
          %v2237 = vadd.s32 %v1621, 4294967232
          %v2238 = vlaneseq
          %v2239 = vshrl.u32 %v2238, 7
          %v2240 = vsub.s32 %v2237, %v2239
          %v2241 = vrot.slane %v2162, %v2240
          %vm2242 = vcmask 589312
          %v2243 = vsel %vm2242, %v2241, %v2236
          %v2244 = vadd.s32 %v1621, 4294967224
          %v2245 = vlaneseq
          %v2246 = vshrl.u32 %v2245, 7
          %v2247 = vsub.s32 %v2244, %v2246
          %v2248 = vrot.slane %v2165, %v2247
          %vm2249 = vcmask 654912
          %v2250 = vsel %vm2249, %v2248, %v2243
          %v2251 = vadd.s32 %v1621, 4294967216
          %v2252 = vlaneseq
          %v2253 = vshrl.u32 %v2252, 7
          %v2254 = vsub.s32 %v2251, %v2253
          %v2255 = vrot.slane %v2168, %v2254
          %vm2256 = vcmask 720512
          %v2257 = vsel %vm2256, %v2255, %v2250
          %v2258 = vadd.s32 %v1621, 4294967208
          %v2259 = vlaneseq
          %v2260 = vshrl.u32 %v2259, 7
          %v2261 = vsub.s32 %v2258, %v2260
          %v2262 = vrot.slane %v2171, %v2261
          %vm2263 = vcmask 786112
          %v2264 = vsel %vm2263, %v2262, %v2257
          %v2265 = vadd.s32 %v1621, 4294967200
          %v2266 = vlaneseq
          %v2267 = vshrl.u32 %v2266, 7
          %v2268 = vsub.s32 %v2265, %v2267
          %v2269 = vrot.slane %v2174, %v2268
          %vm2270 = vcmask 851712
          %v2271 = vsel %vm2270, %v2269, %v2264
          %v2272 = vadd.s32 %v1621, 4294967192
          %v2273 = vlaneseq
          %v2274 = vshrl.u32 %v2273, 7
          %v2275 = vsub.s32 %v2272, %v2274
          %v2276 = vrot.slane %v2177, %v2275
          %vm2277 = vcmask 917312
          %v2278 = vsel %vm2277, %v2276, %v2271
          %v2279 = vadd.s32 %v1621, 4294967184
          %v2280 = vlaneseq
          %v2281 = vshrl.u32 %v2280, 7
          %v2282 = vsub.s32 %v2279, %v2281
          %v2283 = vrot.slane %v2180, %v2282
          %vm2284 = vcmask 982912
          %v2285 = vsel %vm2284, %v2283, %v2278
          %v2286 = vadd.s32 %v1621, 4294967176
          %v2287 = vlaneseq
          %v2288 = vshrl.u32 %v2287, 7
          %v2289 = vsub.s32 %v2286, %v2288
          %v2290 = vrot.slane %v2183, %v2289
          %vm2291 = vcmask 1048512
          %v2292 = vsel %vm2291, %v2290, %v2285
          %s2294 = scalar_lea.vmem %s503, %s1736 [#allocation6]
          %2295 = vst [vmem:[%s2294] sm:$0x1] %v2292
          %s2296 = scalar_lea.vmem %s531, %s1736
          %vm2297 = vcmask 0
          %2298 = vst.msk [vmem:[%s2296] sm:$0x1] %vm2297, %v2119
          %2299 = vset.pattern.permute.xlu0 0
          %2300 = vperm.xlu0 %2299, %v2119
          %v2301 = vpop.permute.xlu0 %2300
          %vm2302 = vcmp.eq.s32.totalorder %v1621, %v2301
          %v2303 = vsel %vm2302, 1, 0
          %v2304 = vcvt.s32.f32 %v2303
          %2306 = vbcast.lane.b32.xlu0 %v2304, 256
          %v2307 = vpop.permute.xlu0 %2306
          %s2309 = sor.u32 256, 8
          %2310 = vbcast.lane.b32.xlu0 %v2304, %s2309
          %v2311 = vpop.permute.xlu0 %2310
          %s2313 = sor.u32 256, 16
          %2314 = vbcast.lane.b32.xlu0 %v2304, %s2313
          %v2315 = vpop.permute.xlu0 %2314
          %s2317 = sor.u32 256, 24
          %2318 = vbcast.lane.b32.xlu0 %v2304, %s2317
          %v2319 = vpop.permute.xlu0 %2318
          %s2321 = sor.u32 256, 32
          %2322 = vbcast.lane.b32.xlu0 %v2304, %s2321
          %v2323 = vpop.permute.xlu0 %2322
          %s2325 = sor.u32 256, 40
          %2326 = vbcast.lane.b32.xlu0 %v2304, %s2325
          %v2327 = vpop.permute.xlu0 %2326
          %s2329 = sor.u32 256, 48
          %2330 = vbcast.lane.b32.xlu0 %v2304, %s2329
          %v2331 = vpop.permute.xlu0 %2330
          %s2333 = sor.u32 256, 56
          %2334 = vbcast.lane.b32.xlu0 %v2304, %s2333
          %v2335 = vpop.permute.xlu0 %2334
          %s2337 = sor.u32 256, 64
          %2338 = vbcast.lane.b32.xlu0 %v2304, %s2337
          %v2339 = vpop.permute.xlu0 %2338
          %s2341 = sor.u32 256, 72
          %2342 = vbcast.lane.b32.xlu0 %v2304, %s2341
          %v2343 = vpop.permute.xlu0 %2342
          %s2345 = sor.u32 256, 80
          %2346 = vbcast.lane.b32.xlu0 %v2304, %s2345
          %v2347 = vpop.permute.xlu0 %2346
          %s2349 = sor.u32 256, 88
          %2350 = vbcast.lane.b32.xlu0 %v2304, %s2349
          %v2351 = vpop.permute.xlu0 %2350
          %s2353 = sor.u32 256, 96
          %2354 = vbcast.lane.b32.xlu0 %v2304, %s2353
          %v2355 = vpop.permute.xlu0 %2354
          %s2357 = sor.u32 256, 104
          %2358 = vbcast.lane.b32.xlu0 %v2304, %s2357
          %v2359 = vpop.permute.xlu0 %2358
          %s2361 = sor.u32 256, 112
          %2362 = vbcast.lane.b32.xlu0 %v2304, %s2361
          %v2363 = vpop.permute.xlu0 %2362
          %s2365 = sor.u32 256, 120
          %2366 = vbcast.lane.b32.xlu0 %v2304, %s2365
          %v2367 = vpop.permute.xlu0 %2366
          %v2368 = vmul.f32 %v2307, %v1418
          %v2369 = vmul.f32 %v2311, %v1424
          %v2370 = vmul.f32 %v2315, %v1430
          %v2371 = vmul.f32 %v2319, %v1436
          %v2372 = vmul.f32 %v2323, %v1442
          %v2373 = vmul.f32 %v2327, %v1448
          %v2374 = vmul.f32 %v2331, %v1454
          %v2375 = vmul.f32 %v2335, %v1460
          %v2376 = vmul.f32 %v2339, %v1466
          %v2377 = vmul.f32 %v2343, %v1472
          %v2378 = vmul.f32 %v2347, %v1478
          %v2379 = vmul.f32 %v2351, %v1484
          %v2380 = vmul.f32 %v2355, %v1490
          %v2381 = vmul.f32 %v2359, %v1496
          %v2382 = vmul.f32 %v2363, %v1502
          %v2383 = vmul.f32 %v2367, %v1508
          %v2384 = vadd.f32 %v2368, %v2369
          %v2385 = vadd.f32 %v2384, %v2370
          %v2386 = vadd.f32 %v2385, %v2371
          %v2387 = vadd.f32 %v2386, %v2372
          %v2388 = vadd.f32 %v2387, %v2373
          %v2389 = vadd.f32 %v2388, %v2374
          %v2390 = vadd.f32 %v2389, %v2375
          %v2391 = vadd.f32 %v2390, %v2376
          %v2392 = vadd.f32 %v2391, %v2377
          %v2393 = vadd.f32 %v2392, %v2378
          %v2394 = vadd.f32 %v2393, %v2379
          %v2395 = vadd.f32 %v2394, %v2380
          %v2396 = vadd.f32 %v2395, %v2381
          %v2397 = vadd.f32 %v2396, %v2382
          %v2398 = vadd.f32 %v2397, %v2383
          %v2399 = vrot.slane %v2398, 4
          %v2400 = vadd.f32 %v2398, %v2399
          %v2401 = vrot.slane %v2400, 2
          %v2402 = vadd.f32 %v2400, %v2401
          %v2403 = vrot.slane %v2402, 1
          %v2404 = vadd.f32 %v2402, %v2403
          %2405 = vst [vmem:[%s1754] sm:$0x1] %v2404
          %vm2406 = vcmp.gt.f32.partialorder %v2304, 0.5
          %v2407 = vld [vmem:[#allocation2] sm:$0x1]
          %v2408 = vsel %vm2406, -1e+09, %v2407
          %2409 = vst [vmem:[#allocation2] sm:$0x1] %v2408
        $region69: #{rl_routing_forward.1} parent=63 // loop_footer
          %s1740 = sadd.s32 1, %s1736
        $region70: #{rl_routing_forward.1} parent=63 // loop_footer_branch
          %1735 = sbr.rel target = $region66
        $region71: #{rl_routing_forward.1} parent=63 // loop_exit
          _
        %p2410 = scmp.lt.s32.totalorder %s32, 1
        %s2411 = scalar_select %p2410, %s32, 1
        %s2412 = smul.addr %s2411, 16
        %s2413 = smul.addr %s2412, 8
        %s2414 = scalar_lea.vmem %s11, %s2413
        %s2415 = sand.u32 %s312, 1
        %s2416 = scalar_lea.sflag [#allocation5], %s2415
        %s2417 = sand.u32 %s312, 1
        %s2418 = scalar_lea.vmem [#allocation4], %s2417
        %s2419 = sand.u32 %s338, 1
        %s2420 = scalar_lea.sflag [#allocation7], %s2419
        %s2421 = sand.u32 %s338, 1
        %s2422 = smul.addr %s2421, 8
        %s2423 = scalar_lea.vmem [#allocation6], %s2422
        %p2424 = scmp.lt.s32.totalorder %s32, 1
        %s2425 = scalar_select %p2424, %s32, 1
        %s2426 = smul.addr %s2425, 8
        %s2427 = scalar_lea.vmem %s14, %s2426
        // Predicated region
        $region72: #{rl_routing_forward.1} parent=63 // pred_check
          %p2428 = pneg %p296
        $region73: #{rl_routing_forward.1} parent=63 // pred_check_branch
          %2430 = sbr.rel (%p2428) target = $region75
        $region74: #{rl_routing_forward.1} parent=63 // pred_region
          _
        $region75: #{rl_routing_forward.1} parent=63 // pred_fallthru
          _
        // Predicated region
        $region76: #{rl_routing_forward.1} parent=63 // pred_check
          %p2431 = pneg %p322
        $region77: #{rl_routing_forward.1} parent=63 // pred_check_branch
          %2433 = sbr.rel (%p2431) target = $region79
        $region78: #{rl_routing_forward.1} parent=63 // pred_region
          %s2435 = ssub.s32 16, 16
          %2436 = vsyncadd %s2416, %s2435
          %s2437 = smul.addr %s32, 16
          %s2438 = scalar_lea.hbm %s12, %s2437
          %s2440 = sshll.u32 %s2418, 4
          %s2441 = int_to_ptr.vmem [resolvable:$true] %s2440
          %2443 = dma.vmem_to_hbm [thread:$0]  %s2441, 16, %s2438, %s2416
        $region79: #{rl_routing_forward.1} parent=63 // pred_fallthru
          _
        // Predicated region
        $region80: #{rl_routing_forward.1} parent=63 // pred_check
          %p2444 = pneg %p348
        $region81: #{rl_routing_forward.1} parent=63 // pred_check_branch
          %2446 = sbr.rel (%p2444) target = $region83
        $region82: #{rl_routing_forward.1} parent=63 // pred_region
          %s2448 = ssub.s32 128, 128
          %2449 = vsyncadd %s2420, %s2448
          %s2450 = smul.addr %s32, 128
          %s2451 = scalar_lea.hbm %s13, %s2450
          %s2453 = sshll.u32 %s2423, 4
          %s2454 = int_to_ptr.vmem [resolvable:$true] %s2453
          %2456 = dma.vmem_to_hbm [thread:$0]  %s2454, 128, %s2451, %s2420
        $region83: #{rl_routing_forward.1} parent=63 // pred_fallthru
          _
        // Predicated region
        $region84: #{rl_routing_forward.1} parent=63 // pred_check
          %p2457 = pneg %p374
        $region85: #{rl_routing_forward.1} parent=63 // pred_check_branch
          %2459 = sbr.rel (%p2457) target = $region87
        $region86: #{rl_routing_forward.1} parent=63 // pred_region
          _
        $region87: #{rl_routing_forward.1} parent=63 // pred_fallthru
          _
      $region64: #{rl_routing_forward.1} parent=5 // pred_fallthru
        _
      %p2460 = scmp.le.s32.totalorder 2, %s27
      // Predicated region
      $region88: #{rl_routing_forward.1} parent=5 // pred_check
        %p2461 = pneg %p2460
      $region89: #{rl_routing_forward.1} parent=5 // pred_check_branch
        %2463 = sbr.rel (%p2461) target = $region91
      $region90: #{rl_routing_forward.1} parent=5 // pred_region
        %s2464 = ssub.s32 %s27, 2
        // Predicated region
        $region92: #{rl_routing_forward.1} parent=90 // pred_check
          %p2465 = pneg %p302
        $region93: #{rl_routing_forward.1} parent=90 // pred_check_branch
          %2467 = sbr.rel (%p2465) target = $region95
        $region94: #{rl_routing_forward.1} parent=90 // pred_region
          %p2468 = scmp.lt.s32.totalorder %s33, 1
          %s2469 = scalar_select %p2468, %s33, 1
          %s2470 = smul.addr %s2469, 16
          %s2471 = smul.addr %s2470, 8
          %s2472 = scalar_lea.vmem %s11, %s2471
        $region95: #{rl_routing_forward.1} parent=90 // pred_fallthru
          _
        // Predicated region
        $region96: #{rl_routing_forward.1} parent=90 // pred_check
          %p2473 = pneg %p328
        $region97: #{rl_routing_forward.1} parent=90 // pred_check_branch
          %2475 = sbr.rel (%p2473) target = $region99
        $region98: #{rl_routing_forward.1} parent=90 // pred_region
          %s2476 = sand.u32 %s313, 1
          %s2477 = scalar_lea.sflag [#allocation5], %s2476
          %s2478 = sand.u32 %s313, 1
          %s2479 = scalar_lea.vmem [#allocation4], %s2478
          %2480 = dma.done %s2477, 16
        $region99: #{rl_routing_forward.1} parent=90 // pred_fallthru
          _
        // Predicated region
        $region100: #{rl_routing_forward.1} parent=90 // pred_check
          %p2481 = pneg %p354
        $region101: #{rl_routing_forward.1} parent=90 // pred_check_branch
          %2483 = sbr.rel (%p2481) target = $region103
        $region102: #{rl_routing_forward.1} parent=90 // pred_region
          %s2484 = sand.u32 %s339, 1
          %s2485 = scalar_lea.sflag [#allocation7], %s2484
          %s2486 = sand.u32 %s339, 1
          %s2487 = smul.addr %s2486, 8
          %s2488 = scalar_lea.vmem [#allocation6], %s2487
          %2489 = dma.done %s2485, 128
        $region103: #{rl_routing_forward.1} parent=90 // pred_fallthru
          _
        // Predicated region
        $region104: #{rl_routing_forward.1} parent=90 // pred_check
          %p2490 = pneg %p380
        $region105: #{rl_routing_forward.1} parent=90 // pred_check_branch
          %2492 = sbr.rel (%p2490) target = $region107
        $region106: #{rl_routing_forward.1} parent=90 // pred_region
          %p2493 = scmp.lt.s32.totalorder %s33, 1
          %s2494 = scalar_select %p2493, %s33, 1
          %s2495 = smul.addr %s2494, 8
          %s2496 = scalar_lea.vmem %s14, %s2495
        $region107: #{rl_routing_forward.1} parent=90 // pred_fallthru
          _
      $region91: #{rl_routing_forward.1} parent=5 // pred_fallthru
        _
    $region6: #{rl_routing_forward.1} parent=1 // loop_footer
      %s31 = sadd.s32 1, %s27
    $region7: #{rl_routing_forward.1} parent=1 // loop_footer_branch
      %26 = sbr.rel target = $region3
    $region8: #{rl_routing_forward.1} parent=1 // loop_exit
      _
    %2497 = vsyncpa [#allocation5], 1
    %s2498 = scalar_lea.sflag [#allocation5], 1
    %2499 = vsyncpa %s2498, 1
    %2500 = vsyncpa [#allocation7], 1
    %s2501 = scalar_lea.sflag [#allocation7], 1
    %2502 = vsyncpa %s2501, 1

</llo_original>
